<compile_context>
chip_gen: v7x
topology: tpu7x:2x2x1
jax: 0.10.0
libtpu: 0.0.40
codegen_flags: <defaults>
</compile_context>

<pallas_src>
import jax
import jax.numpy as jnp
from jax.experimental import pallas as pl
from jax.experimental.pallas import tpu as pltpu

IN_DIM = 3 * 32 * 32     # 3072 = 24 * 128 (lane aligned)
H1_DIM = 256
H2_DIM = 128
OUT_DIM = 10
OUT_PAD = 128            # pad FC3 output columns 10 -> 128 for lane-dense stores
MAX_TILE_M = 512         # large batch tile: ~85% of HBM roofline, fits 32 MiB VMEM
VMEM_LIMIT = 32 * 1024 * 1024


def _round_up(x, m):
    return ((x + m - 1) // m) * m


def _choose_tile_m(n, max_tile=MAX_TILE_M):
    """Adaptive batch tile (multiple of 16 rows)."""
    n16 = _round_up(max(n, 1), 16)
    if n16 >= 2 * max_tile:
        return max_tile                                   # large batch: big tiles, many steps
    if n16 >= 64:
        # medium batch: aim for >=2 grid steps so v7x's two TensorCores both get work
        return min(max_tile, _round_up(pl.cdiv(n16, 2), 16))
    return n16                                            # tiny batch: one tile, minimal padding


def mlp_kernel(x_ref, w1_ref, b1_ref, w2_ref, b2_ref, w3_ref, b3_ref, o_ref):
    # x tile arrives as f32; cast to bf16 in-kernel (hidden under the x DMA).
    x = x_ref[...].astype(jnp.bfloat16)
    h1 = jnp.dot(x, w1_ref[...], preferred_element_type=jnp.float32) + b1_ref[...]
    h1 = jnp.maximum(h1, 0.0)                                        # ReLU (f32)
    h2 = jnp.dot(h1.astype(jnp.bfloat16), w2_ref[...],
                 preferred_element_type=jnp.float32) + b2_ref[...]
    h2 = jnp.maximum(h2, 0.0)                                        # ReLU (f32)
    o_ref[...] = jnp.dot(h2.astype(jnp.bfloat16), w3_ref[...],
                         preferred_element_type=jnp.float32) + b3_ref[...]


def net3_forward(x, params):
    """x: (n, 3, 32, 32) float32; params: dict of (in, out) weights / (1, out) biases."""
    n = x.shape[0]
    x2d = x.reshape((n, IN_DIM))                          # free bitcast; stays f32

    tile_m = _choose_tile_m(n)
    n_pad = _round_up(n, tile_m)
    if n_pad != n:                                        # only materialize a pad when needed
        x2d = jnp.pad(x2d, ((0, n_pad - n), (0, 0)))

    # Parameter prep: bf16 weights, f32 biases, FC3 padded to 128 cols.
    w1 = params["w1"].astype(jnp.bfloat16)
    w2 = params["w2"].astype(jnp.bfloat16)
    w3 = jnp.pad(params["w3"], ((0, 0), (0, OUT_PAD - OUT_DIM))).astype(jnp.bfloat16)
    b1 = params["b1"].astype(jnp.float32)
    b2 = params["b2"].astype(jnp.float32)
    b3 = jnp.pad(params["b3"], ((0, 0), (0, OUT_PAD - OUT_DIM))).astype(jnp.float32)

    grid = (n_pad // tile_m,)
    const = lambda i: (0, 0)   # weights/biases: same block every step -> stay resident

    flops = 2 * n_pad * (IN_DIM * H1_DIM + H1_DIM * H2_DIM + H2_DIM * OUT_PAD)
    bytes_accessed = (
        n_pad * IN_DIM * 4                                            # x (f32, cast in-kernel)
        + (IN_DIM * H1_DIM + H1_DIM * H2_DIM + H2_DIM * OUT_PAD) * 2  # weights (bf16)
        + (H1_DIM + H2_DIM + OUT_PAD) * 4                             # biases (f32)
        + n_pad * OUT_PAD * 4                                         # output (f32, lane-dense)
    )

    out = pl.pallas_call(
        mlp_kernel,
        out_shape=jax.ShapeDtypeStruct((n_pad, OUT_PAD), jnp.float32),
        grid_spec=pltpu.PrefetchScalarGridSpec(
            num_scalar_prefetch=0,
            grid=grid,
            in_specs=[
                pl.BlockSpec((tile_m, IN_DIM), lambda i: (i, 0)),     # x: streamed per tile
                pl.BlockSpec((IN_DIM, H1_DIM), const),                # w1: resident
                pl.BlockSpec((1, H1_DIM), const),                     # b1: resident
                pl.BlockSpec((H1_DIM, H2_DIM), const),                # w2: resident
                pl.BlockSpec((1, H2_DIM), const),                     # b2: resident
                pl.BlockSpec((H2_DIM, OUT_PAD), const),               # w3 (padded): resident
                pl.BlockSpec((1, OUT_PAD), const),                    # b3 (padded): resident
            ],
            out_specs=pl.BlockSpec((tile_m, OUT_PAD), lambda i: (i, 0)),
        ),
        compiler_params=pltpu.CompilerParams(
            dimension_semantics=("parallel",),                        # megacore on v7x
            vmem_limit_bytes=VMEM_LIMIT,                              # 512-row f32 x fits on v5e too
        ),
        cost_estimate=pl.CostEstimate(
            flops=flops, bytes_accessed=bytes_accessed, transcendentals=0),
    )(x2d, w1, b1, w2, b2, w3, b3)

    return out[:n, :OUT_DIM]


def init_params(key):
    """Linear shapes matching PyTorch: FC1 (256,3072), FC2 (128,256), FC3 (10,128),
    stored transposed as (in, out). Uniform(-1/sqrt(fan_in), 1/sqrt(fan_in)) like torch."""
    def linear(k, fan_in, fan_out):
        kw, kb = jax.random.split(k)
        bound = 1.0 / jnp.sqrt(fan_in)
        w = jax.random.uniform(kw, (fan_in, fan_out), jnp.float32, -bound, bound)
        b = jax.random.uniform(kb, (1, fan_out), jnp.float32, -bound, bound)
        return w, b

    k1, k2, k3 = jax.random.split(key, 3)
    w1, b1 = linear(k1, IN_DIM, H1_DIM)
    w2, b2 = linear(k2, H1_DIM, H2_DIM)
    w3, b3 = linear(k3, H2_DIM, OUT_DIM)
    return {"w1": w1, "b1": b1, "w2": w2, "b2": b2, "w3": w3, "b3": b3}


def net3_reference(x, params):
    """Pure-JAX f32 reference matching the PyTorch forward."""
    n = x.shape[0]
    h = x.reshape((n, IN_DIM))
    h = jnp.maximum(h @ params["w1"] + params["b1"], 0.0)
    h = jnp.maximum(h @ params["w2"] + params["b2"], 0.0)
    return h @ params["w3"] + params["b3"]


if __name__ == "__main__":
    key = jax.random.PRNGKey(0)
    kx, kp, kx2 = jax.random.split(key, 3)
    params = init_params(kp)

    # Small demo batch (spatial dims are fixed by the module: 3x32x32 = FC1 input).
    x = jax.random.normal(kx, (4, 3, 32, 32), jnp.float32)
    out = jax.block_until_ready(net3_forward(x, params))
    ref = net3_reference(x, params)
    assert out.shape == (4, OUT_DIM)
    # bf16 weights/activations on the MXU with f32 accumulation -> relaxed tolerance.
    assert jnp.allclose(out, ref, atol=5e-2, rtol=5e-2), float(jnp.max(jnp.abs(out - ref)))

    # Second small batch exercising the multi-step (>=2 grid tiles) path.
    x2 = jax.random.normal(kx2, (96, 3, 32, 32), jnp.float32)
    out2 = jax.block_until_ready(net3_forward(x2, params))
    ref2 = net3_reference(x2, params)
    assert out2.shape == (96, OUT_DIM)
    assert jnp.allclose(out2, ref2, atol=5e-2, rtol=5e-2), float(jnp.max(jnp.abs(out2 - ref2)))

    print("KERNEL_OK")
</pallas_src>

<mosaic_0001>
module attributes {stable_mosaic.version = 11 : i64} {
  func.func @mlp_kernel(%arg0: i32, %arg1: memref<16x3072xf32, #tpu.memory_space<vmem>>, %arg2: memref<3072x256xbf16, #tpu.memory_space<vmem>>, %arg3: memref<1x256xf32, #tpu.memory_space<vmem>>, %arg4: memref<256x128xbf16, #tpu.memory_space<vmem>>, %arg5: memref<1x128xf32, #tpu.memory_space<vmem>>, %arg6: memref<128x128xbf16, #tpu.memory_space<vmem>>, %arg7: memref<1x128xf32, #tpu.memory_space<vmem>>, %arg8: memref<16x128xf32, #tpu.memory_space<vmem>>) attributes {dimension_semantics = [#tpu.dimension_semantics<parallel>], iteration_bounds = array<i64: 1>, scalar_prefetch = 0 : i64, scratch_operands = 0 : i64, tpu.core_type = #tpu.core_type<tc>, window_params = [{transform_indices = @transform_0, window_bounds = array<i64: 16, 3072>}, {pipeline_mode = #tpu.pipeline_mode<synchronous>, transform_indices = @transform_1, window_bounds = array<i64: 3072, 256>}, {pipeline_mode = #tpu.pipeline_mode<synchronous>, transform_indices = @transform_2, window_bounds = array<i64: 1, 256>}, {pipeline_mode = #tpu.pipeline_mode<synchronous>, transform_indices = @transform_3, window_bounds = array<i64: 256, 128>}, {pipeline_mode = #tpu.pipeline_mode<synchronous>, transform_indices = @transform_4, window_bounds = array<i64: 1, 128>}, {pipeline_mode = #tpu.pipeline_mode<synchronous>, transform_indices = @transform_5, window_bounds = array<i64: 128, 128>}, {pipeline_mode = #tpu.pipeline_mode<synchronous>, transform_indices = @transform_6, window_bounds = array<i64: 1, 128>}, {transform_indices = @transform_7, window_bounds = array<i64: 16, 128>}]} {
    %c0 = arith.constant 0 : index
    %c0_0 = arith.constant 0 : index
    %0 = vector.load %arg1[%c0, %c0_0] : memref<16x3072xf32, #tpu.memory_space<vmem>>, vector<16x3072xf32>
    %1 = arith.truncf %0 : vector<16x3072xf32> to vector<16x3072xbf16>
    %c0_1 = arith.constant 0 : index
    %c0_2 = arith.constant 0 : index
    %2 = vector.load %arg2[%c0_1, %c0_2] : memref<3072x256xbf16, #tpu.memory_space<vmem>>, vector<3072x256xbf16>
    %cst = arith.constant dense<0.000000e+00> : vector<16x256xf32>
    %3 = tpu.matmul %1, %2, %cst {dimension_numbers = #tpu.dot_dimension_numbers<[1], [0], [0], [1], [0, 0, 1, 1], [], []>} : vector<16x3072xbf16>, vector<3072x256xbf16>, vector<16x256xf32> -> vector<16x256xf32>
    %c0_3 = arith.constant 0 : index
    %c0_4 = arith.constant 0 : index
    %4 = vector.load %arg3[%c0_3, %c0_4] : memref<1x256xf32, #tpu.memory_space<vmem>>, vector<1x256xf32>
    %5 = vector.broadcast %4 : vector<1x256xf32> to vector<16x256xf32>
    %6 = arith.addf %3, %5 : vector<16x256xf32>
    %cst_5 = arith.constant 0.000000e+00 : f32
    %7 = vector.broadcast %cst_5 : f32 to vector<16x256xf32>
    %8 = arith.maximumf %6, %7 : vector<16x256xf32>
    %9 = arith.truncf %8 : vector<16x256xf32> to vector<16x256xbf16>
    %c0_6 = arith.constant 0 : index
    %c0_7 = arith.constant 0 : index
    %10 = vector.load %arg4[%c0_6, %c0_7] : memref<256x128xbf16, #tpu.memory_space<vmem>>, vector<256x128xbf16>
    %cst_8 = arith.constant dense<0.000000e+00> : vector<16x128xf32>
    %11 = tpu.matmul %9, %10, %cst_8 {dimension_numbers = #tpu.dot_dimension_numbers<[1], [0], [0], [1], [0, 0, 1, 1], [], []>} : vector<16x256xbf16>, vector<256x128xbf16>, vector<16x128xf32> -> vector<16x128xf32>
    %c0_9 = arith.constant 0 : index
    %c0_10 = arith.constant 0 : index
    %12 = vector.load %arg5[%c0_9, %c0_10] : memref<1x128xf32, #tpu.memory_space<vmem>>, vector<1x128xf32>
    %13 = vector.broadcast %12 : vector<1x128xf32> to vector<16x128xf32>
    %14 = arith.addf %11, %13 : vector<16x128xf32>
    %cst_11 = arith.constant 0.000000e+00 : f32
    %15 = vector.broadcast %cst_11 : f32 to vector<16x128xf32>
    %16 = arith.maximumf %14, %15 : vector<16x128xf32>
    %17 = arith.truncf %16 : vector<16x128xf32> to vector<16x128xbf16>
    %c0_12 = arith.constant 0 : index
    %c0_13 = arith.constant 0 : index
    %18 = vector.load %arg6[%c0_12, %c0_13] : memref<128x128xbf16, #tpu.memory_space<vmem>>, vector<128x128xbf16>
    %cst_14 = arith.constant dense<0.000000e+00> : vector<16x128xf32>
    %19 = tpu.matmul %17, %18, %cst_14 {dimension_numbers = #tpu.dot_dimension_numbers<[1], [0], [0], [1], [0, 0, 1, 1], [], []>} : vector<16x128xbf16>, vector<128x128xbf16>, vector<16x128xf32> -> vector<16x128xf32>
    %c0_15 = arith.constant 0 : index
    %c0_16 = arith.constant 0 : index
    %20 = vector.load %arg7[%c0_15, %c0_16] : memref<1x128xf32, #tpu.memory_space<vmem>>, vector<1x128xf32>
    %21 = vector.broadcast %20 : vector<1x128xf32> to vector<16x128xf32>
    %22 = arith.addf %19, %21 : vector<16x128xf32>
    %c0_17 = arith.constant 0 : index
    %c0_18 = arith.constant 0 : index
    %23 = vector.load %arg8[%c0_17, %c0_18] : memref<16x128xf32, #tpu.memory_space<vmem>>, vector<16x128xf32>
    tpu.vector_store %arg8[%c0_17, %c0_18], %22 {strides = array<i32>} : memref<16x128xf32, #tpu.memory_space<vmem>>, vector<16x128xf32>,
    return
  }
  func.func @transform_0(%arg0: i32) -> (i32, i32) {
    %c0_i32 = arith.constant 0 : i32
    %c0_i32_0 = arith.constant 0 : i32
    return %arg0, %c0_i32 : i32, i32
  }
  func.func @transform_1(%arg0: i32) -> (i32, i32) {
    %c0_i32 = arith.constant 0 : i32
    %c0_i32_0 = arith.constant 0 : i32
    %c0_i32_1 = arith.constant 0 : i32
    return %c0_i32, %c0_i32_0 : i32, i32
  }
  func.func @transform_2(%arg0: i32) -> (i32, i32) {
    %c0_i32 = arith.constant 0 : i32
    %c0_i32_0 = arith.constant 0 : i32
    %c0_i32_1 = arith.constant 0 : i32
    return %c0_i32, %c0_i32_0 : i32, i32
  }
  func.func @transform_3(%arg0: i32) -> (i32, i32) {
    %c0_i32 = arith.constant 0 : i32
    %c0_i32_0 = arith.constant 0 : i32
    %c0_i32_1 = arith.constant 0 : i32
    return %c0_i32, %c0_i32_0 : i32, i32
  }
  func.func @transform_4(%arg0: i32) -> (i32, i32) {
    %c0_i32 = arith.constant 0 : i32
    %c0_i32_0 = arith.constant 0 : i32
    %c0_i32_1 = arith.constant 0 : i32
    return %c0_i32, %c0_i32_0 : i32, i32
  }
  func.func @transform_5(%arg0: i32) -> (i32, i32) {
    %c0_i32 = arith.constant 0 : i32
    %c0_i32_0 = arith.constant 0 : i32
    %c0_i32_1 = arith.constant 0 : i32
    return %c0_i32, %c0_i32_0 : i32, i32
  }
  func.func @transform_6(%arg0: i32) -> (i32, i32) {
    %c0_i32 = arith.constant 0 : i32
    %c0_i32_0 = arith.constant 0 : i32
    %c0_i32_1 = arith.constant 0 : i32
    return %c0_i32, %c0_i32_0 : i32, i32
  }
  func.func @transform_7(%arg0: i32) -> (i32, i32) {
    %c0_i32 = arith.constant 0 : i32
    %c0_i32_0 = arith.constant 0 : i32
    return %arg0, %c0_i32 : i32, i32
  }
}

</mosaic_0001>

<llo_original>
// kernel: tpu_custom_call.1
$region0: #{tpu_custom_call.1}
  #allocation0 [shape = 'u32[]', space=smem, size = 0x4, offset = 0x4, fixed_abs, tag = 'smem constant byte address 0x4 - core index']
  #allocation1 [shape = 'u32[144,128]{1,0:T(1,128)}', space=vmem, size = 0x12000, scoped, tag = 'internal scratch']
  %s0 = inlined_call_operand.hbm [shape: f32[16,3072], index: 0, kind: input, shape index: {}]
  %s1 = inlined_call_operand.hbm [shape: bf16[3072,256], index: 1, kind: input, shape index: {}]
  %s2 = inlined_call_operand.hbm [shape: f32[1,256], index: 2, kind: input, shape index: {}]
  %s3 = inlined_call_operand.hbm [shape: bf16[256,128], index: 3, kind: input, shape index: {}]
  %s4 = inlined_call_operand.hbm [shape: f32[1,128], index: 4, kind: input, shape index: {}]
  %s5 = inlined_call_operand.hbm [shape: bf16[128,128], index: 5, kind: input, shape index: {}]
  %s6 = inlined_call_operand.hbm [shape: f32[1,128], index: 6, kind: input, shape index: {}]
  %s7 = inlined_call_operand.hbm [shape: f32[16,128], index: 7, kind: output, shape index: {}]
  %s8 = sld [smem:[#allocation0]]
  $region66: #{tpu_custom_call.1} parent=0
    _
  %s10 = ssub.s32 1, %s8
  %s11 = scalar_select 0, %s10, %s8
  $region1: #{tpu_custom_call.1} parent=0
    #allocation2 [shape = 'u8[196608]{0}', space=vmem, size = 0x30000, scoped, tag = 'input window, operand 0, single buffered']
    #allocation3 [shape = 's32[1]{0}', space=sflag, size = 0x4, scoped, tag = 'scoped memory for tpu_custom_call.1']
    #allocation4 [shape = 's32[1]{0}', space=sflag, size = 0x4, scoped, tag = 'scoped memory for tpu_custom_call.1']
    #allocation5 [shape = 'u8[1572864]{0}', space=vmem, size = 0x180000, scoped, tag = 'input window, operand 1, single buffered']
    #allocation6 [shape = 's32[1]{0}', space=sflag, size = 0x4, scoped, tag = 'scoped memory for tpu_custom_call.1']
    #allocation7 [shape = 'u8[1024]{0}', space=vmem, size = 0x400, scoped, tag = 'input window, operand 2, single buffered']
    #allocation8 [shape = 'u8[65536]{0}', space=vmem, size = 0x10000, scoped, tag = 'input window, operand 3, single buffered']
    #allocation9 [shape = 's32[1]{0}', space=sflag, size = 0x4, scoped, tag = 'scoped memory for tpu_custom_call.1']
    #allocation10 [shape = 'u8[512]{0}', space=vmem, size = 0x400, scoped, tag = 'input window, operand 4, single buffered']
    #allocation11 [shape = 'u8[32768]{0}', space=vmem, size = 0x8000, scoped, tag = 'input window, operand 5, single buffered']
    #allocation12 [shape = 's32[1]{0}', space=sflag, size = 0x4, scoped, tag = 'scoped memory for tpu_custom_call.1']
    #allocation13 [shape = 'u8[512]{0}', space=vmem, size = 0x400, scoped, tag = 'input window, operand 6, single buffered']
    #allocation14 [shape = 'u8[8192]{0}', space=vmem, size = 0x2000, scoped, tag = 'output window, operand 0, single buffered']
    %12 = vsyncpa [#allocation3], 0
    %13 = vsyncpa [#allocation6], 0
    %14 = vsyncpa [#allocation9], 0
    %15 = vsyncpa [#allocation12], 0
    %16 = vsyncpa [#allocation4], 0
    // Predicated region
    $region2: #{tpu_custom_call.1} parent=1 // pred_check
      _
    $region3: #{tpu_custom_call.1} parent=1 // pred_check_branch
      %18 = sbr.rel (0) target = $region5
    $region4: #{tpu_custom_call.1} parent=1 // pred_region
      %s20 = ssub.s32 6144, 6144
      %21 = vsyncadd [#allocation3], %s20
      %s22 = sshll.u32 [#allocation2], 4
      %s23 = int_to_ptr.vmem [resolvable:$true] %s22
      %28 = dma.hbm_to_vmem [thread:$0]  %s0, 6144, %s23, [#allocation3], 3072, 3072, 192
    $region5: #{tpu_custom_call.1} parent=1 // pred_fallthru
      _
    // Predicated region
    $region6: #{tpu_custom_call.1} parent=1 // pred_check
      _
    $region7: #{tpu_custom_call.1} parent=1 // pred_check_branch
      %30 = sbr.rel (0) target = $region9
    $region8: #{tpu_custom_call.1} parent=1 // pred_region
      %s32 = ssub.s32 49152, 49152
      %33 = vsyncadd [#allocation6], %s32
      %s34 = sshll.u32 [#allocation5], 4
      %s35 = int_to_ptr.vmem [resolvable:$true] %s34
      %40 = dma.hbm_to_vmem [thread:$0]  %s1, 49152, %s35, [#allocation6], 128, 128, 8
    $region9: #{tpu_custom_call.1} parent=1 // pred_fallthru
      _
    // Predicated region
    $region10: #{tpu_custom_call.1} parent=1 // pred_check
      _
    $region11: #{tpu_custom_call.1} parent=1 // pred_check_branch
      %42 = sbr.rel (0) target = $region13
    $region12: #{tpu_custom_call.1} parent=1 // pred_region
      %s44 = ssub.s32 32, 32
      %45 = vsyncadd [#allocation6], %s44
      %s47 = sshll.u32 [#allocation7], 4
      %s48 = int_to_ptr.vmem [resolvable:$true] %s47
      %50 = dma.hbm_to_vmem [thread:$0]  %s2, 32, %s48, [#allocation6]
    $region13: #{tpu_custom_call.1} parent=1 // pred_fallthru
      _
    // Predicated region
    $region14: #{tpu_custom_call.1} parent=1 // pred_check
      _
    $region15: #{tpu_custom_call.1} parent=1 // pred_check_branch
      %52 = sbr.rel (0) target = $region17
    $region16: #{tpu_custom_call.1} parent=1 // pred_region
      %s54 = ssub.s32 2048, 2048
      %55 = vsyncadd [#allocation9], %s54
      %s56 = sshll.u32 [#allocation8], 4
      %s57 = int_to_ptr.vmem [resolvable:$true] %s56
      %62 = dma.hbm_to_vmem [thread:$0]  %s3, 2048, %s57, [#allocation9], 64, 64, 4
    $region17: #{tpu_custom_call.1} parent=1 // pred_fallthru
      _
    // Predicated region
    $region18: #{tpu_custom_call.1} parent=1 // pred_check
      _
    $region19: #{tpu_custom_call.1} parent=1 // pred_check_branch
      %64 = sbr.rel (0) target = $region21
    $region20: #{tpu_custom_call.1} parent=1 // pred_region
      %s66 = ssub.s32 16, 16
      %67 = vsyncadd [#allocation9], %s66
      %s69 = sshll.u32 [#allocation10], 4
      %s70 = int_to_ptr.vmem [resolvable:$true] %s69
      %72 = dma.hbm_to_vmem [thread:$0]  %s4, 16, %s70, [#allocation9]
    $region21: #{tpu_custom_call.1} parent=1 // pred_fallthru
      _
    // Predicated region
    $region22: #{tpu_custom_call.1} parent=1 // pred_check
      _
    $region23: #{tpu_custom_call.1} parent=1 // pred_check_branch
      %74 = sbr.rel (0) target = $region25
    $region24: #{tpu_custom_call.1} parent=1 // pred_region
      %s76 = ssub.s32 1024, 1024
      %77 = vsyncadd [#allocation12], %s76
      %s78 = sshll.u32 [#allocation11], 4
      %s79 = int_to_ptr.vmem [resolvable:$true] %s78
      %84 = dma.hbm_to_vmem [thread:$0]  %s5, 1024, %s79, [#allocation12], 64, 64, 4
    $region25: #{tpu_custom_call.1} parent=1 // pred_fallthru
      _
    // Predicated region
    $region26: #{tpu_custom_call.1} parent=1 // pred_check
      _
    $region27: #{tpu_custom_call.1} parent=1 // pred_check_branch
      %86 = sbr.rel (0) target = $region29
    $region28: #{tpu_custom_call.1} parent=1 // pred_region
      %s88 = ssub.s32 16, 16
      %89 = vsyncadd [#allocation12], %s88
      %s91 = sshll.u32 [#allocation13], 4
      %s92 = int_to_ptr.vmem [resolvable:$true] %s91
      %94 = dma.hbm_to_vmem [thread:$0]  %s6, 16, %s92, [#allocation12]
    $region29: #{tpu_custom_call.1} parent=1 // pred_fallthru
      _
    // Predicated region
    $region30: #{tpu_custom_call.1} parent=1 // pred_check
      _
    $region31: #{tpu_custom_call.1} parent=1 // pred_check_branch
      %96 = sbr.rel (0) target = $region33
    $region32: #{tpu_custom_call.1} parent=1 // pred_region
      %97 = dma.done [#allocation3], 6144
    $region33: #{tpu_custom_call.1} parent=1 // pred_fallthru
      _
    // Predicated region
    $region34: #{tpu_custom_call.1} parent=1 // pred_check
      _
    $region35: #{tpu_custom_call.1} parent=1 // pred_check_branch
      %99 = sbr.rel (0) target = $region37
    $region36: #{tpu_custom_call.1} parent=1 // pred_region
      %100 = dma.done [#allocation6], 49152
    $region37: #{tpu_custom_call.1} parent=1 // pred_fallthru
      _
    // Predicated region
    $region38: #{tpu_custom_call.1} parent=1 // pred_check
      _
    $region39: #{tpu_custom_call.1} parent=1 // pred_check_branch
      %102 = sbr.rel (0) target = $region41
    $region40: #{tpu_custom_call.1} parent=1 // pred_region
      %103 = dma.done [#allocation6], 32
    $region41: #{tpu_custom_call.1} parent=1 // pred_fallthru
      _
    // Predicated region
    $region42: #{tpu_custom_call.1} parent=1 // pred_check
      _
    $region43: #{tpu_custom_call.1} parent=1 // pred_check_branch
      %105 = sbr.rel (0) target = $region45
    $region44: #{tpu_custom_call.1} parent=1 // pred_region
      %106 = dma.done [#allocation9], 2048
    $region45: #{tpu_custom_call.1} parent=1 // pred_fallthru
      _
    // Predicated region
    $region46: #{tpu_custom_call.1} parent=1 // pred_check
      _
    $region47: #{tpu_custom_call.1} parent=1 // pred_check_branch
      %108 = sbr.rel (0) target = $region49
    $region48: #{tpu_custom_call.1} parent=1 // pred_region
      %109 = dma.done [#allocation9], 16
    $region49: #{tpu_custom_call.1} parent=1 // pred_fallthru
      _
    // Predicated region
    $region50: #{tpu_custom_call.1} parent=1 // pred_check
      _
    $region51: #{tpu_custom_call.1} parent=1 // pred_check_branch
      %111 = sbr.rel (0) target = $region53
    $region52: #{tpu_custom_call.1} parent=1 // pred_region
      %112 = dma.done [#allocation12], 1024
    $region53: #{tpu_custom_call.1} parent=1 // pred_fallthru
      _
    // Predicated region
    $region54: #{tpu_custom_call.1} parent=1 // pred_check
      _
    $region55: #{tpu_custom_call.1} parent=1 // pred_check_branch
      %114 = sbr.rel (0) target = $region57
    $region56: #{tpu_custom_call.1} parent=1 // pred_region
      %115 = dma.done [#allocation12], 16
    $region57: #{tpu_custom_call.1} parent=1 // pred_fallthru
      _
    %v117 = vld [vmem:[#allocation2] sm:$0xff]
    %v118 = vld [vmem:[#allocation2 + $0x8] sm:$0xff]
    %v119 = vld [vmem:[#allocation2 + $0x10] sm:$0xff]
    %v120 = vld [vmem:[#allocation2 + $0x18] sm:$0xff]
    %v121 = vld [vmem:[#allocation2 + $0x20] sm:$0xff]
    %v122 = vld [vmem:[#allocation2 + $0x28] sm:$0xff]
    %v123 = vld [vmem:[#allocation2 + $0x30] sm:$0xff]
    %v124 = vld [vmem:[#allocation2 + $0x38] sm:$0xff]
    %v125 = vld [vmem:[#allocation2 + $0x40] sm:$0xff]
    %v126 = vld [vmem:[#allocation2 + $0x48] sm:$0xff]
    %v127 = vld [vmem:[#allocation2 + $0x50] sm:$0xff]
    %v128 = vld [vmem:[#allocation2 + $0x58] sm:$0xff]
    %v129 = vld [vmem:[#allocation2 + $0x60] sm:$0xff]
    %v130 = vld [vmem:[#allocation2 + $0x68] sm:$0xff]
    %v131 = vld [vmem:[#allocation2 + $0x70] sm:$0xff]
    %v132 = vld [vmem:[#allocation2 + $0x78] sm:$0xff]
    %v133 = vld [vmem:[#allocation2 + $0x80] sm:$0xff]
    %v134 = vld [vmem:[#allocation2 + $0x88] sm:$0xff]
    %v135 = vld [vmem:[#allocation2 + $0x90] sm:$0xff]
    %v136 = vld [vmem:[#allocation2 + $0x98] sm:$0xff]
    %v137 = vld [vmem:[#allocation2 + $0xa0] sm:$0xff]
    %v138 = vld [vmem:[#allocation2 + $0xa8] sm:$0xff]
    %v139 = vld [vmem:[#allocation2 + $0xb0] sm:$0xff]
    %v140 = vld [vmem:[#allocation2 + $0xb8] sm:$0xff]
    %v141 = vld [vmem:[#allocation2 + $0xc0] sm:$0xff]
    %v142 = vld [vmem:[#allocation2 + $0xc8] sm:$0xff]
    %v143 = vld [vmem:[#allocation2 + $0xd0] sm:$0xff]
    %v144 = vld [vmem:[#allocation2 + $0xd8] sm:$0xff]
    %v145 = vld [vmem:[#allocation2 + $0xe0] sm:$0xff]
    %v146 = vld [vmem:[#allocation2 + $0xe8] sm:$0xff]
    %v147 = vld [vmem:[#allocation2 + $0xf0] sm:$0xff]
    %v148 = vld [vmem:[#allocation2 + $0xf8] sm:$0xff]
    %v149 = vld [vmem:[#allocation2 + $0x100] sm:$0xff]
    %v150 = vld [vmem:[#allocation2 + $0x108] sm:$0xff]
    %v151 = vld [vmem:[#allocation2 + $0x110] sm:$0xff]
    %v152 = vld [vmem:[#allocation2 + $0x118] sm:$0xff]
    %v153 = vld [vmem:[#allocation2 + $0x120] sm:$0xff]
    %v154 = vld [vmem:[#allocation2 + $0x128] sm:$0xff]
    %v155 = vld [vmem:[#allocation2 + $0x130] sm:$0xff]
    %v156 = vld [vmem:[#allocation2 + $0x138] sm:$0xff]
    %v157 = vld [vmem:[#allocation2 + $0x140] sm:$0xff]
    %v158 = vld [vmem:[#allocation2 + $0x148] sm:$0xff]
    %v159 = vld [vmem:[#allocation2 + $0x150] sm:$0xff]
    %v160 = vld [vmem:[#allocation2 + $0x158] sm:$0xff]
    %v161 = vld [vmem:[#allocation2 + $0x160] sm:$0xff]
    %v162 = vld [vmem:[#allocation2 + $0x168] sm:$0xff]
    %v163 = vld [vmem:[#allocation2 + $0x170] sm:$0xff]
    %v164 = vld [vmem:[#allocation2 + $0x178] sm:$0xff]
    %v165 = vpack.c.bf16 %v141, %v117
    %v166 = vpack.c.bf16 %v142, %v118
    %v167 = vpack.c.bf16 %v143, %v119
    %v168 = vpack.c.bf16 %v144, %v120
    %v169 = vpack.c.bf16 %v145, %v121
    %v170 = vpack.c.bf16 %v146, %v122
    %v171 = vpack.c.bf16 %v147, %v123
    %v172 = vpack.c.bf16 %v148, %v124
    %v173 = vpack.c.bf16 %v149, %v125
    %v174 = vpack.c.bf16 %v150, %v126
    %v175 = vpack.c.bf16 %v151, %v127
    %v176 = vpack.c.bf16 %v152, %v128
    %v177 = vpack.c.bf16 %v153, %v129
    %v178 = vpack.c.bf16 %v154, %v130
    %v179 = vpack.c.bf16 %v155, %v131
    %v180 = vpack.c.bf16 %v156, %v132
    %v181 = vpack.c.bf16 %v157, %v133
    %v182 = vpack.c.bf16 %v158, %v134
    %v183 = vpack.c.bf16 %v159, %v135
    %v184 = vpack.c.bf16 %v160, %v136
    %v185 = vpack.c.bf16 %v161, %v137
    %v186 = vpack.c.bf16 %v162, %v138
    %v187 = vpack.c.bf16 %v163, %v139
    %v188 = vpack.c.bf16 %v164, %v140
    %v189 = vld [vmem:[#allocation5] sm:$0xff]
    %v190 = vld [vmem:[#allocation5 + $0x8] sm:$0xff]
    %v191 = vld [vmem:[#allocation5 + $0x10] sm:$0xff]
    %v192 = vld [vmem:[#allocation5 + $0x18] sm:$0xff]
    %v193 = vld [vmem:[#allocation5 + $0x20] sm:$0xff]
    %v194 = vld [vmem:[#allocation5 + $0x28] sm:$0xff]
    %v195 = vld [vmem:[#allocation5 + $0x30] sm:$0xff]
    %v196 = vld [vmem:[#allocation5 + $0x38] sm:$0xff]
    %v197 = vld [vmem:[#allocation5 + $0x40] sm:$0xff]
    %v198 = vld [vmem:[#allocation5 + $0x48] sm:$0xff]
    %v199 = vld [vmem:[#allocation5 + $0x50] sm:$0xff]
    %v200 = vld [vmem:[#allocation5 + $0x58] sm:$0xff]
    %v201 = vld [vmem:[#allocation5 + $0x60] sm:$0xff]
    %v202 = vld [vmem:[#allocation5 + $0x68] sm:$0xff]
    %v203 = vld [vmem:[#allocation5 + $0x70] sm:$0xff]
    %v204 = vld [vmem:[#allocation5 + $0x78] sm:$0xff]
    %v205 = vld [vmem:[#allocation5 + $0x80] sm:$0xff]
    %v206 = vld [vmem:[#allocation5 + $0x88] sm:$0xff]
    %v207 = vld [vmem:[#allocation5 + $0x90] sm:$0xff]
    %v208 = vld [vmem:[#allocation5 + $0x98] sm:$0xff]
    %v209 = vld [vmem:[#allocation5 + $0xa0] sm:$0xff]
    %v210 = vld [vmem:[#allocation5 + $0xa8] sm:$0xff]
    %v211 = vld [vmem:[#allocation5 + $0xb0] sm:$0xff]
    %v212 = vld [vmem:[#allocation5 + $0xb8] sm:$0xff]
    %v213 = vld [vmem:[#allocation5 + $0xc0] sm:$0xff]
    %v214 = vld [vmem:[#allocation5 + $0xc8] sm:$0xff]
    %v215 = vld [vmem:[#allocation5 + $0xd0] sm:$0xff]
    %v216 = vld [vmem:[#allocation5 + $0xd8] sm:$0xff]
    %v217 = vld [vmem:[#allocation5 + $0xe0] sm:$0xff]
    %v218 = vld [vmem:[#allocation5 + $0xe8] sm:$0xff]
    %v219 = vld [vmem:[#allocation5 + $0xf0] sm:$0xff]
    %v220 = vld [vmem:[#allocation5 + $0xf8] sm:$0xff]
    %v221 = vld [vmem:[#allocation5 + $0x100] sm:$0xff]
    %v222 = vld [vmem:[#allocation5 + $0x108] sm:$0xff]
    %v223 = vld [vmem:[#allocation5 + $0x110] sm:$0xff]
    %v224 = vld [vmem:[#allocation5 + $0x118] sm:$0xff]
    %v225 = vld [vmem:[#allocation5 + $0x120] sm:$0xff]
    %v226 = vld [vmem:[#allocation5 + $0x128] sm:$0xff]
    %v227 = vld [vmem:[#allocation5 + $0x130] sm:$0xff]
    %v228 = vld [vmem:[#allocation5 + $0x138] sm:$0xff]
    %v229 = vld [vmem:[#allocation5 + $0x140] sm:$0xff]
    %v230 = vld [vmem:[#allocation5 + $0x148] sm:$0xff]
    %v231 = vld [vmem:[#allocation5 + $0x150] sm:$0xff]
    %v232 = vld [vmem:[#allocation5 + $0x158] sm:$0xff]
    %v233 = vld [vmem:[#allocation5 + $0x160] sm:$0xff]
    %v234 = vld [vmem:[#allocation5 + $0x168] sm:$0xff]
    %v235 = vld [vmem:[#allocation5 + $0x170] sm:$0xff]
    %v236 = vld [vmem:[#allocation5 + $0x178] sm:$0xff]
    %v237 = vld [vmem:[#allocation5 + $0x180] sm:$0xff]
    %v238 = vld [vmem:[#allocation5 + $0x188] sm:$0xff]
    %v239 = vld [vmem:[#allocation5 + $0x190] sm:$0xff]
    %v240 = vld [vmem:[#allocation5 + $0x198] sm:$0xff]
    %v241 = vld [vmem:[#allocation5 + $0x1a0] sm:$0xff]
    %v242 = vld [vmem:[#allocation5 + $0x1a8] sm:$0xff]
    %v243 = vld [vmem:[#allocation5 + $0x1b0] sm:$0xff]
    %v244 = vld [vmem:[#allocation5 + $0x1b8] sm:$0xff]
    %v245 = vld [vmem:[#allocation5 + $0x1c0] sm:$0xff]
    %v246 = vld [vmem:[#allocation5 + $0x1c8] sm:$0xff]
    %v247 = vld [vmem:[#allocation5 + $0x1d0] sm:$0xff]
    %v248 = vld [vmem:[#allocation5 + $0x1d8] sm:$0xff]
    %v249 = vld [vmem:[#allocation5 + $0x1e0] sm:$0xff]
    %v250 = vld [vmem:[#allocation5 + $0x1e8] sm:$0xff]
    %v251 = vld [vmem:[#allocation5 + $0x1f0] sm:$0xff]
    %v252 = vld [vmem:[#allocation5 + $0x1f8] sm:$0xff]
    %v253 = vld [vmem:[#allocation5 + $0x200] sm:$0xff]
    %v254 = vld [vmem:[#allocation5 + $0x208] sm:$0xff]
    %v255 = vld [vmem:[#allocation5 + $0x210] sm:$0xff]
    %v256 = vld [vmem:[#allocation5 + $0x218] sm:$0xff]
    %v257 = vld [vmem:[#allocation5 + $0x220] sm:$0xff]
    %v258 = vld [vmem:[#allocation5 + $0x228] sm:$0xff]
    %v259 = vld [vmem:[#allocation5 + $0x230] sm:$0xff]
    %v260 = vld [vmem:[#allocation5 + $0x238] sm:$0xff]
    %v261 = vld [vmem:[#allocation5 + $0x240] sm:$0xff]
    %v262 = vld [vmem:[#allocation5 + $0x248] sm:$0xff]
    %v263 = vld [vmem:[#allocation5 + $0x250] sm:$0xff]
    %v264 = vld [vmem:[#allocation5 + $0x258] sm:$0xff]
    %v265 = vld [vmem:[#allocation5 + $0x260] sm:$0xff]
    %v266 = vld [vmem:[#allocation5 + $0x268] sm:$0xff]
    %v267 = vld [vmem:[#allocation5 + $0x270] sm:$0xff]
    %v268 = vld [vmem:[#allocation5 + $0x278] sm:$0xff]
    %v269 = vld [vmem:[#allocation5 + $0x280] sm:$0xff]
    %v270 = vld [vmem:[#allocation5 + $0x288] sm:$0xff]
    %v271 = vld [vmem:[#allocation5 + $0x290] sm:$0xff]
    %v272 = vld [vmem:[#allocation5 + $0x298] sm:$0xff]
    %v273 = vld [vmem:[#allocation5 + $0x2a0] sm:$0xff]
    %v274 = vld [vmem:[#allocation5 + $0x2a8] sm:$0xff]
    %v275 = vld [vmem:[#allocation5 + $0x2b0] sm:$0xff]
    %v276 = vld [vmem:[#allocation5 + $0x2b8] sm:$0xff]
    %v277 = vld [vmem:[#allocation5 + $0x2c0] sm:$0xff]
    %v278 = vld [vmem:[#allocation5 + $0x2c8] sm:$0xff]
    %v279 = vld [vmem:[#allocation5 + $0x2d0] sm:$0xff]
    %v280 = vld [vmem:[#allocation5 + $0x2d8] sm:$0xff]
    %v281 = vld [vmem:[#allocation5 + $0x2e0] sm:$0xff]
    %v282 = vld [vmem:[#allocation5 + $0x2e8] sm:$0xff]
    %v283 = vld [vmem:[#allocation5 + $0x2f0] sm:$0xff]
    %v284 = vld [vmem:[#allocation5 + $0x2f8] sm:$0xff]
    %v285 = vld [vmem:[#allocation5 + $0x300] sm:$0xff]
    %v286 = vld [vmem:[#allocation5 + $0x308] sm:$0xff]
    %v287 = vld [vmem:[#allocation5 + $0x310] sm:$0xff]
    %v288 = vld [vmem:[#allocation5 + $0x318] sm:$0xff]
    %v289 = vld [vmem:[#allocation5 + $0x320] sm:$0xff]
    %v290 = vld [vmem:[#allocation5 + $0x328] sm:$0xff]
    %v291 = vld [vmem:[#allocation5 + $0x330] sm:$0xff]
    %v292 = vld [vmem:[#allocation5 + $0x338] sm:$0xff]
    %v293 = vld [vmem:[#allocation5 + $0x340] sm:$0xff]
    %v294 = vld [vmem:[#allocation5 + $0x348] sm:$0xff]
    %v295 = vld [vmem:[#allocation5 + $0x350] sm:$0xff]
    %v296 = vld [vmem:[#allocation5 + $0x358] sm:$0xff]
    %v297 = vld [vmem:[#allocation5 + $0x360] sm:$0xff]
    %v298 = vld [vmem:[#allocation5 + $0x368] sm:$0xff]
    %v299 = vld [vmem:[#allocation5 + $0x370] sm:$0xff]
    %v300 = vld [vmem:[#allocation5 + $0x378] sm:$0xff]
    %v301 = vld [vmem:[#allocation5 + $0x380] sm:$0xff]
    %v302 = vld [vmem:[#allocation5 + $0x388] sm:$0xff]
    %v303 = vld [vmem:[#allocation5 + $0x390] sm:$0xff]
    %v304 = vld [vmem:[#allocation5 + $0x398] sm:$0xff]
    %v305 = vld [vmem:[#allocation5 + $0x3a0] sm:$0xff]
    %v306 = vld [vmem:[#allocation5 + $0x3a8] sm:$0xff]
    %v307 = vld [vmem:[#allocation5 + $0x3b0] sm:$0xff]
    %v308 = vld [vmem:[#allocation5 + $0x3b8] sm:$0xff]
    %v309 = vld [vmem:[#allocation5 + $0x3c0] sm:$0xff]
    %v310 = vld [vmem:[#allocation5 + $0x3c8] sm:$0xff]
    %v311 = vld [vmem:[#allocation5 + $0x3d0] sm:$0xff]
    %v312 = vld [vmem:[#allocation5 + $0x3d8] sm:$0xff]
    %v313 = vld [vmem:[#allocation5 + $0x3e0] sm:$0xff]
    %v314 = vld [vmem:[#allocation5 + $0x3e8] sm:$0xff]
    %v315 = vld [vmem:[#allocation5 + $0x3f0] sm:$0xff]
    %v316 = vld [vmem:[#allocation5 + $0x3f8] sm:$0xff]
    %v317 = vld [vmem:[#allocation5 + $0x400] sm:$0xff]
    %v318 = vld [vmem:[#allocation5 + $0x408] sm:$0xff]
    %v319 = vld [vmem:[#allocation5 + $0x410] sm:$0xff]
    %v320 = vld [vmem:[#allocation5 + $0x418] sm:$0xff]
    %v321 = vld [vmem:[#allocation5 + $0x420] sm:$0xff]
    %v322 = vld [vmem:[#allocation5 + $0x428] sm:$0xff]
    %v323 = vld [vmem:[#allocation5 + $0x430] sm:$0xff]
    %v324 = vld [vmem:[#allocation5 + $0x438] sm:$0xff]
    %v325 = vld [vmem:[#allocation5 + $0x440] sm:$0xff]
    %v326 = vld [vmem:[#allocation5 + $0x448] sm:$0xff]
    %v327 = vld [vmem:[#allocation5 + $0x450] sm:$0xff]
    %v328 = vld [vmem:[#allocation5 + $0x458] sm:$0xff]
    %v329 = vld [vmem:[#allocation5 + $0x460] sm:$0xff]
    %v330 = vld [vmem:[#allocation5 + $0x468] sm:$0xff]
    %v331 = vld [vmem:[#allocation5 + $0x470] sm:$0xff]
    %v332 = vld [vmem:[#allocation5 + $0x478] sm:$0xff]
    %v333 = vld [vmem:[#allocation5 + $0x480] sm:$0xff]
    %v334 = vld [vmem:[#allocation5 + $0x488] sm:$0xff]
    %v335 = vld [vmem:[#allocation5 + $0x490] sm:$0xff]
    %v336 = vld [vmem:[#allocation5 + $0x498] sm:$0xff]
    %v337 = vld [vmem:[#allocation5 + $0x4a0] sm:$0xff]
    %v338 = vld [vmem:[#allocation5 + $0x4a8] sm:$0xff]
    %v339 = vld [vmem:[#allocation5 + $0x4b0] sm:$0xff]
    %v340 = vld [vmem:[#allocation5 + $0x4b8] sm:$0xff]
    %v341 = vld [vmem:[#allocation5 + $0x4c0] sm:$0xff]
    %v342 = vld [vmem:[#allocation5 + $0x4c8] sm:$0xff]
    %v343 = vld [vmem:[#allocation5 + $0x4d0] sm:$0xff]
    %v344 = vld [vmem:[#allocation5 + $0x4d8] sm:$0xff]
    %v345 = vld [vmem:[#allocation5 + $0x4e0] sm:$0xff]
    %v346 = vld [vmem:[#allocation5 + $0x4e8] sm:$0xff]
    %v347 = vld [vmem:[#allocation5 + $0x4f0] sm:$0xff]
    %v348 = vld [vmem:[#allocation5 + $0x4f8] sm:$0xff]
    %v349 = vld [vmem:[#allocation5 + $0x500] sm:$0xff]
    %v350 = vld [vmem:[#allocation5 + $0x508] sm:$0xff]
    %v351 = vld [vmem:[#allocation5 + $0x510] sm:$0xff]
    %v352 = vld [vmem:[#allocation5 + $0x518] sm:$0xff]
    %v353 = vld [vmem:[#allocation5 + $0x520] sm:$0xff]
    %v354 = vld [vmem:[#allocation5 + $0x528] sm:$0xff]
    %v355 = vld [vmem:[#allocation5 + $0x530] sm:$0xff]
    %v356 = vld [vmem:[#allocation5 + $0x538] sm:$0xff]
    %v357 = vld [vmem:[#allocation5 + $0x540] sm:$0xff]
    %v358 = vld [vmem:[#allocation5 + $0x548] sm:$0xff]
    %v359 = vld [vmem:[#allocation5 + $0x550] sm:$0xff]
    %v360 = vld [vmem:[#allocation5 + $0x558] sm:$0xff]
    %v361 = vld [vmem:[#allocation5 + $0x560] sm:$0xff]
    %v362 = vld [vmem:[#allocation5 + $0x568] sm:$0xff]
    %v363 = vld [vmem:[#allocation5 + $0x570] sm:$0xff]
    %v364 = vld [vmem:[#allocation5 + $0x578] sm:$0xff]
    %v365 = vld [vmem:[#allocation5 + $0x580] sm:$0xff]
    %v366 = vld [vmem:[#allocation5 + $0x588] sm:$0xff]
    %v367 = vld [vmem:[#allocation5 + $0x590] sm:$0xff]
    %v368 = vld [vmem:[#allocation5 + $0x598] sm:$0xff]
    %v369 = vld [vmem:[#allocation5 + $0x5a0] sm:$0xff]
    %v370 = vld [vmem:[#allocation5 + $0x5a8] sm:$0xff]
    %v371 = vld [vmem:[#allocation5 + $0x5b0] sm:$0xff]
    %v372 = vld [vmem:[#allocation5 + $0x5b8] sm:$0xff]
    %v373 = vld [vmem:[#allocation5 + $0x5c0] sm:$0xff]
    %v374 = vld [vmem:[#allocation5 + $0x5c8] sm:$0xff]
    %v375 = vld [vmem:[#allocation5 + $0x5d0] sm:$0xff]
    %v376 = vld [vmem:[#allocation5 + $0x5d8] sm:$0xff]
    %v377 = vld [vmem:[#allocation5 + $0x5e0] sm:$0xff]
    %v378 = vld [vmem:[#allocation5 + $0x5e8] sm:$0xff]
    %v379 = vld [vmem:[#allocation5 + $0x5f0] sm:$0xff]
    %v380 = vld [vmem:[#allocation5 + $0x5f8] sm:$0xff]
    %v381 = vld [vmem:[#allocation5 + $0x600] sm:$0xff]
    %v382 = vld [vmem:[#allocation5 + $0x608] sm:$0xff]
    %v383 = vld [vmem:[#allocation5 + $0x610] sm:$0xff]
    %v384 = vld [vmem:[#allocation5 + $0x618] sm:$0xff]
    %v385 = vld [vmem:[#allocation5 + $0x620] sm:$0xff]
    %v386 = vld [vmem:[#allocation5 + $0x628] sm:$0xff]
    %v387 = vld [vmem:[#allocation5 + $0x630] sm:$0xff]
    %v388 = vld [vmem:[#allocation5 + $0x638] sm:$0xff]
    %v389 = vld [vmem:[#allocation5 + $0x640] sm:$0xff]
    %v390 = vld [vmem:[#allocation5 + $0x648] sm:$0xff]
    %v391 = vld [vmem:[#allocation5 + $0x650] sm:$0xff]
    %v392 = vld [vmem:[#allocation5 + $0x658] sm:$0xff]
    %v393 = vld [vmem:[#allocation5 + $0x660] sm:$0xff]
    %v394 = vld [vmem:[#allocation5 + $0x668] sm:$0xff]
    %v395 = vld [vmem:[#allocation5 + $0x670] sm:$0xff]
    %v396 = vld [vmem:[#allocation5 + $0x678] sm:$0xff]
    %v397 = vld [vmem:[#allocation5 + $0x680] sm:$0xff]
    %v398 = vld [vmem:[#allocation5 + $0x688] sm:$0xff]
    %v399 = vld [vmem:[#allocation5 + $0x690] sm:$0xff]
    %v400 = vld [vmem:[#allocation5 + $0x698] sm:$0xff]
    %v401 = vld [vmem:[#allocation5 + $0x6a0] sm:$0xff]
    %v402 = vld [vmem:[#allocation5 + $0x6a8] sm:$0xff]
    %v403 = vld [vmem:[#allocation5 + $0x6b0] sm:$0xff]
    %v404 = vld [vmem:[#allocation5 + $0x6b8] sm:$0xff]
    %v405 = vld [vmem:[#allocation5 + $0x6c0] sm:$0xff]
    %v406 = vld [vmem:[#allocation5 + $0x6c8] sm:$0xff]
    %v407 = vld [vmem:[#allocation5 + $0x6d0] sm:$0xff]
    %v408 = vld [vmem:[#allocation5 + $0x6d8] sm:$0xff]
    %v409 = vld [vmem:[#allocation5 + $0x6e0] sm:$0xff]
    %v410 = vld [vmem:[#allocation5 + $0x6e8] sm:$0xff]
    %v411 = vld [vmem:[#allocation5 + $0x6f0] sm:$0xff]
    %v412 = vld [vmem:[#allocation5 + $0x6f8] sm:$0xff]
    %v413 = vld [vmem:[#allocation5 + $0x700] sm:$0xff]
    %v414 = vld [vmem:[#allocation5 + $0x708] sm:$0xff]
    %v415 = vld [vmem:[#allocation5 + $0x710] sm:$0xff]
    %v416 = vld [vmem:[#allocation5 + $0x718] sm:$0xff]
    %v417 = vld [vmem:[#allocation5 + $0x720] sm:$0xff]
    %v418 = vld [vmem:[#allocation5 + $0x728] sm:$0xff]
    %v419 = vld [vmem:[#allocation5 + $0x730] sm:$0xff]
    %v420 = vld [vmem:[#allocation5 + $0x738] sm:$0xff]
    %v421 = vld [vmem:[#allocation5 + $0x740] sm:$0xff]
    %v422 = vld [vmem:[#allocation5 + $0x748] sm:$0xff]
    %v423 = vld [vmem:[#allocation5 + $0x750] sm:$0xff]
    %v424 = vld [vmem:[#allocation5 + $0x758] sm:$0xff]
    %v425 = vld [vmem:[#allocation5 + $0x760] sm:$0xff]
    %v426 = vld [vmem:[#allocation5 + $0x768] sm:$0xff]
    %v427 = vld [vmem:[#allocation5 + $0x770] sm:$0xff]
    %v428 = vld [vmem:[#allocation5 + $0x778] sm:$0xff]
    %v429 = vld [vmem:[#allocation5 + $0x780] sm:$0xff]
    %v430 = vld [vmem:[#allocation5 + $0x788] sm:$0xff]
    %v431 = vld [vmem:[#allocation5 + $0x790] sm:$0xff]
    %v432 = vld [vmem:[#allocation5 + $0x798] sm:$0xff]
    %v433 = vld [vmem:[#allocation5 + $0x7a0] sm:$0xff]
    %v434 = vld [vmem:[#allocation5 + $0x7a8] sm:$0xff]
    %v435 = vld [vmem:[#allocation5 + $0x7b0] sm:$0xff]
    %v436 = vld [vmem:[#allocation5 + $0x7b8] sm:$0xff]
    %v437 = vld [vmem:[#allocation5 + $0x7c0] sm:$0xff]
    %v438 = vld [vmem:[#allocation5 + $0x7c8] sm:$0xff]
    %v439 = vld [vmem:[#allocation5 + $0x7d0] sm:$0xff]
    %v440 = vld [vmem:[#allocation5 + $0x7d8] sm:$0xff]
    %v441 = vld [vmem:[#allocation5 + $0x7e0] sm:$0xff]
    %v442 = vld [vmem:[#allocation5 + $0x7e8] sm:$0xff]
    %v443 = vld [vmem:[#allocation5 + $0x7f0] sm:$0xff]
    %v444 = vld [vmem:[#allocation5 + $0x7f8] sm:$0xff]
    %v445 = vld [vmem:[#allocation5 + $0x800] sm:$0xff]
    %v446 = vld [vmem:[#allocation5 + $0x808] sm:$0xff]
    %v447 = vld [vmem:[#allocation5 + $0x810] sm:$0xff]
    %v448 = vld [vmem:[#allocation5 + $0x818] sm:$0xff]
    %v449 = vld [vmem:[#allocation5 + $0x820] sm:$0xff]
    %v450 = vld [vmem:[#allocation5 + $0x828] sm:$0xff]
    %v451 = vld [vmem:[#allocation5 + $0x830] sm:$0xff]
    %v452 = vld [vmem:[#allocation5 + $0x838] sm:$0xff]
    %v453 = vld [vmem:[#allocation5 + $0x840] sm:$0xff]
    %v454 = vld [vmem:[#allocation5 + $0x848] sm:$0xff]
    %v455 = vld [vmem:[#allocation5 + $0x850] sm:$0xff]
    %v456 = vld [vmem:[#allocation5 + $0x858] sm:$0xff]
    %v457 = vld [vmem:[#allocation5 + $0x860] sm:$0xff]
    %v458 = vld [vmem:[#allocation5 + $0x868] sm:$0xff]
    %v459 = vld [vmem:[#allocation5 + $0x870] sm:$0xff]
    %v460 = vld [vmem:[#allocation5 + $0x878] sm:$0xff]
    %v461 = vld [vmem:[#allocation5 + $0x880] sm:$0xff]
    %v462 = vld [vmem:[#allocation5 + $0x888] sm:$0xff]
    %v463 = vld [vmem:[#allocation5 + $0x890] sm:$0xff]
    %v464 = vld [vmem:[#allocation5 + $0x898] sm:$0xff]
    %v465 = vld [vmem:[#allocation5 + $0x8a0] sm:$0xff]
    %v466 = vld [vmem:[#allocation5 + $0x8a8] sm:$0xff]
    %v467 = vld [vmem:[#allocation5 + $0x8b0] sm:$0xff]
    %v468 = vld [vmem:[#allocation5 + $0x8b8] sm:$0xff]
    %v469 = vld [vmem:[#allocation5 + $0x8c0] sm:$0xff]
    %v470 = vld [vmem:[#allocation5 + $0x8c8] sm:$0xff]
    %v471 = vld [vmem:[#allocation5 + $0x8d0] sm:$0xff]
    %v472 = vld [vmem:[#allocation5 + $0x8d8] sm:$0xff]
    %v473 = vld [vmem:[#allocation5 + $0x8e0] sm:$0xff]
    %v474 = vld [vmem:[#allocation5 + $0x8e8] sm:$0xff]
    %v475 = vld [vmem:[#allocation5 + $0x8f0] sm:$0xff]
    %v476 = vld [vmem:[#allocation5 + $0x8f8] sm:$0xff]
    %v477 = vld [vmem:[#allocation5 + $0x900] sm:$0xff]
    %v478 = vld [vmem:[#allocation5 + $0x908] sm:$0xff]
    %v479 = vld [vmem:[#allocation5 + $0x910] sm:$0xff]
    %v480 = vld [vmem:[#allocation5 + $0x918] sm:$0xff]
    %v481 = vld [vmem:[#allocation5 + $0x920] sm:$0xff]
    %v482 = vld [vmem:[#allocation5 + $0x928] sm:$0xff]
    %v483 = vld [vmem:[#allocation5 + $0x930] sm:$0xff]
    %v484 = vld [vmem:[#allocation5 + $0x938] sm:$0xff]
    %v485 = vld [vmem:[#allocation5 + $0x940] sm:$0xff]
    %v486 = vld [vmem:[#allocation5 + $0x948] sm:$0xff]
    %v487 = vld [vmem:[#allocation5 + $0x950] sm:$0xff]
    %v488 = vld [vmem:[#allocation5 + $0x958] sm:$0xff]
    %v489 = vld [vmem:[#allocation5 + $0x960] sm:$0xff]
    %v490 = vld [vmem:[#allocation5 + $0x968] sm:$0xff]
    %v491 = vld [vmem:[#allocation5 + $0x970] sm:$0xff]
    %v492 = vld [vmem:[#allocation5 + $0x978] sm:$0xff]
    %v493 = vld [vmem:[#allocation5 + $0x980] sm:$0xff]
    %v494 = vld [vmem:[#allocation5 + $0x988] sm:$0xff]
    %v495 = vld [vmem:[#allocation5 + $0x990] sm:$0xff]
    %v496 = vld [vmem:[#allocation5 + $0x998] sm:$0xff]
    %v497 = vld [vmem:[#allocation5 + $0x9a0] sm:$0xff]
    %v498 = vld [vmem:[#allocation5 + $0x9a8] sm:$0xff]
    %v499 = vld [vmem:[#allocation5 + $0x9b0] sm:$0xff]
    %v500 = vld [vmem:[#allocation5 + $0x9b8] sm:$0xff]
    %v501 = vld [vmem:[#allocation5 + $0x9c0] sm:$0xff]
    %v502 = vld [vmem:[#allocation5 + $0x9c8] sm:$0xff]
    %v503 = vld [vmem:[#allocation5 + $0x9d0] sm:$0xff]
    %v504 = vld [vmem:[#allocation5 + $0x9d8] sm:$0xff]
    %v505 = vld [vmem:[#allocation5 + $0x9e0] sm:$0xff]
    %v506 = vld [vmem:[#allocation5 + $0x9e8] sm:$0xff]
    %v507 = vld [vmem:[#allocation5 + $0x9f0] sm:$0xff]
    %v508 = vld [vmem:[#allocation5 + $0x9f8] sm:$0xff]
    %v509 = vld [vmem:[#allocation5 + $0xa00] sm:$0xff]
    %v510 = vld [vmem:[#allocation5 + $0xa08] sm:$0xff]
    %v511 = vld [vmem:[#allocation5 + $0xa10] sm:$0xff]
    %v512 = vld [vmem:[#allocation5 + $0xa18] sm:$0xff]
    %v513 = vld [vmem:[#allocation5 + $0xa20] sm:$0xff]
    %v514 = vld [vmem:[#allocation5 + $0xa28] sm:$0xff]
    %v515 = vld [vmem:[#allocation5 + $0xa30] sm:$0xff]
    %v516 = vld [vmem:[#allocation5 + $0xa38] sm:$0xff]
    %v517 = vld [vmem:[#allocation5 + $0xa40] sm:$0xff]
    %v518 = vld [vmem:[#allocation5 + $0xa48] sm:$0xff]
    %v519 = vld [vmem:[#allocation5 + $0xa50] sm:$0xff]
    %v520 = vld [vmem:[#allocation5 + $0xa58] sm:$0xff]
    %v521 = vld [vmem:[#allocation5 + $0xa60] sm:$0xff]
    %v522 = vld [vmem:[#allocation5 + $0xa68] sm:$0xff]
    %v523 = vld [vmem:[#allocation5 + $0xa70] sm:$0xff]
    %v524 = vld [vmem:[#allocation5 + $0xa78] sm:$0xff]
    %v525 = vld [vmem:[#allocation5 + $0xa80] sm:$0xff]
    %v526 = vld [vmem:[#allocation5 + $0xa88] sm:$0xff]
    %v527 = vld [vmem:[#allocation5 + $0xa90] sm:$0xff]
    %v528 = vld [vmem:[#allocation5 + $0xa98] sm:$0xff]
    %v529 = vld [vmem:[#allocation5 + $0xaa0] sm:$0xff]
    %v530 = vld [vmem:[#allocation5 + $0xaa8] sm:$0xff]
    %v531 = vld [vmem:[#allocation5 + $0xab0] sm:$0xff]
    %v532 = vld [vmem:[#allocation5 + $0xab8] sm:$0xff]
    %v533 = vld [vmem:[#allocation5 + $0xac0] sm:$0xff]
    %v534 = vld [vmem:[#allocation5 + $0xac8] sm:$0xff]
    %v535 = vld [vmem:[#allocation5 + $0xad0] sm:$0xff]
    %v536 = vld [vmem:[#allocation5 + $0xad8] sm:$0xff]
    %v537 = vld [vmem:[#allocation5 + $0xae0] sm:$0xff]
    %v538 = vld [vmem:[#allocation5 + $0xae8] sm:$0xff]
    %v539 = vld [vmem:[#allocation5 + $0xaf0] sm:$0xff]
    %v540 = vld [vmem:[#allocation5 + $0xaf8] sm:$0xff]
    %v541 = vld [vmem:[#allocation5 + $0xb00] sm:$0xff]
    %v542 = vld [vmem:[#allocation5 + $0xb08] sm:$0xff]
    %v543 = vld [vmem:[#allocation5 + $0xb10] sm:$0xff]
    %v544 = vld [vmem:[#allocation5 + $0xb18] sm:$0xff]
    %v545 = vld [vmem:[#allocation5 + $0xb20] sm:$0xff]
    %v546 = vld [vmem:[#allocation5 + $0xb28] sm:$0xff]
    %v547 = vld [vmem:[#allocation5 + $0xb30] sm:$0xff]
    %v548 = vld [vmem:[#allocation5 + $0xb38] sm:$0xff]
    %v549 = vld [vmem:[#allocation5 + $0xb40] sm:$0xff]
    %v550 = vld [vmem:[#allocation5 + $0xb48] sm:$0xff]
    %v551 = vld [vmem:[#allocation5 + $0xb50] sm:$0xff]
    %v552 = vld [vmem:[#allocation5 + $0xb58] sm:$0xff]
    %v553 = vld [vmem:[#allocation5 + $0xb60] sm:$0xff]
    %v554 = vld [vmem:[#allocation5 + $0xb68] sm:$0xff]
    %v555 = vld [vmem:[#allocation5 + $0xb70] sm:$0xff]
    %v556 = vld [vmem:[#allocation5 + $0xb78] sm:$0xff]
    %v557 = vld [vmem:[#allocation5 + $0xb80] sm:$0xff]
    %v558 = vld [vmem:[#allocation5 + $0xb88] sm:$0xff]
    %v559 = vld [vmem:[#allocation5 + $0xb90] sm:$0xff]
    %v560 = vld [vmem:[#allocation5 + $0xb98] sm:$0xff]
    %v561 = vld [vmem:[#allocation5 + $0xba0] sm:$0xff]
    %v562 = vld [vmem:[#allocation5 + $0xba8] sm:$0xff]
    %v563 = vld [vmem:[#allocation5 + $0xbb0] sm:$0xff]
    %v564 = vld [vmem:[#allocation5 + $0xbb8] sm:$0xff]
    %v565 = vld [vmem:[#allocation5 + $0xbc0] sm:$0xff]
    %v566 = vld [vmem:[#allocation5 + $0xbc8] sm:$0xff]
    %v567 = vld [vmem:[#allocation5 + $0xbd0] sm:$0xff]
    %v568 = vld [vmem:[#allocation5 + $0xbd8] sm:$0xff]
    %v569 = vld [vmem:[#allocation5 + $0xbe0] sm:$0xff]
    %v570 = vld [vmem:[#allocation5 + $0xbe8] sm:$0xff]
    %v571 = vld [vmem:[#allocation5 + $0xbf0] sm:$0xff]
    %v572 = vld [vmem:[#allocation5 + $0xbf8] sm:$0xff]
    %v573 = vld [vmem:[#allocation7] sm:$0x3]
    %v575 = vlaneseq
    %v576 = vshrl.u32 %v575, 7
    %v577 = vsub.s32 0, %v576
    %v578 = vrot.slane %v573, %v577
    %v579 = vlaneseq
    %v580 = vshrl.u32 %v579, 7
    %v581 = vsub.s32 1, %v580
    %v582 = vrot.slane %v573, %v581
    %v969 = vunpack.c.l.b16 %v189
    %v970 = vunpack.c.h.b16 %v189
    %v971 = vunpack.c.l.b16 %v190
    %v972 = vunpack.c.h.b16 %v190
    %v973 = vunpack.c.l.b16 %v191
    %v974 = vunpack.c.h.b16 %v191
    %v975 = vunpack.c.l.b16 %v192
    %v976 = vunpack.c.h.b16 %v192
    %v977 = vunpack.c.l.b16 %v193
    %v978 = vunpack.c.h.b16 %v193
    %v979 = vunpack.c.l.b16 %v194
    %v980 = vunpack.c.h.b16 %v194
    %v981 = vunpack.c.l.b16 %v195
    %v982 = vunpack.c.h.b16 %v195
    %v983 = vunpack.c.l.b16 %v196
    %v984 = vunpack.c.h.b16 %v196
    %v985 = vunpack.c.l.b16 %v197
    %v986 = vunpack.c.h.b16 %v197
    %v987 = vunpack.c.l.b16 %v198
    %v988 = vunpack.c.h.b16 %v198
    %v989 = vunpack.c.l.b16 %v199
    %v990 = vunpack.c.h.b16 %v199
    %v991 = vunpack.c.l.b16 %v200
    %v992 = vunpack.c.h.b16 %v200
    %v993 = vunpack.c.l.b16 %v201
    %v994 = vunpack.c.h.b16 %v201
    %v995 = vunpack.c.l.b16 %v202
    %v996 = vunpack.c.h.b16 %v202
    %v997 = vunpack.c.l.b16 %v203
    %v998 = vunpack.c.h.b16 %v203
    %v999 = vunpack.c.l.b16 %v204
    %v1000 = vunpack.c.h.b16 %v204
    %v1001 = vunpack.c.l.b16 %v205
    %v1002 = vunpack.c.h.b16 %v205
    %v1003 = vunpack.c.l.b16 %v206
    %v1004 = vunpack.c.h.b16 %v206
    %v1005 = vunpack.c.l.b16 %v207
    %v1006 = vunpack.c.h.b16 %v207
    %v1007 = vunpack.c.l.b16 %v208
    %v1008 = vunpack.c.h.b16 %v208
    %v1009 = vunpack.c.l.b16 %v209
    %v1010 = vunpack.c.h.b16 %v209
    %v1011 = vunpack.c.l.b16 %v210
    %v1012 = vunpack.c.h.b16 %v210
    %v1013 = vunpack.c.l.b16 %v211
    %v1014 = vunpack.c.h.b16 %v211
    %v1015 = vunpack.c.l.b16 %v212
    %v1016 = vunpack.c.h.b16 %v212
    %v1017 = vunpack.c.l.b16 %v213
    %v1018 = vunpack.c.h.b16 %v213
    %v1019 = vunpack.c.l.b16 %v214
    %v1020 = vunpack.c.h.b16 %v214
    %v1021 = vunpack.c.l.b16 %v215
    %v1022 = vunpack.c.h.b16 %v215
    %v1023 = vunpack.c.l.b16 %v216
    %v1024 = vunpack.c.h.b16 %v216
    %v1025 = vunpack.c.l.b16 %v217
    %v1026 = vunpack.c.h.b16 %v217
    %v1027 = vunpack.c.l.b16 %v218
    %v1028 = vunpack.c.h.b16 %v218
    %v1029 = vunpack.c.l.b16 %v219
    %v1030 = vunpack.c.h.b16 %v219
    %v1031 = vunpack.c.l.b16 %v220
    %v1032 = vunpack.c.h.b16 %v220
    %v1033 = vunpack.c.l.b16 %v221
    %v1034 = vunpack.c.h.b16 %v221
    %v1035 = vunpack.c.l.b16 %v222
    %v1036 = vunpack.c.h.b16 %v222
    %v1037 = vunpack.c.l.b16 %v223
    %v1038 = vunpack.c.h.b16 %v223
    %v1039 = vunpack.c.l.b16 %v224
    %v1040 = vunpack.c.h.b16 %v224
    %v1041 = vunpack.c.l.b16 %v225
    %v1042 = vunpack.c.h.b16 %v225
    %v1043 = vunpack.c.l.b16 %v226
    %v1044 = vunpack.c.h.b16 %v226
    %v1045 = vunpack.c.l.b16 %v227
    %v1046 = vunpack.c.h.b16 %v227
    %v1047 = vunpack.c.l.b16 %v228
    %v1048 = vunpack.c.h.b16 %v228
    %v1049 = vunpack.c.l.b16 %v229
    %v1050 = vunpack.c.h.b16 %v229
    %v1051 = vunpack.c.l.b16 %v230
    %v1052 = vunpack.c.h.b16 %v230
    %v1053 = vunpack.c.l.b16 %v231
    %v1054 = vunpack.c.h.b16 %v231
    %v1055 = vunpack.c.l.b16 %v232
    %v1056 = vunpack.c.h.b16 %v232
    %v1057 = vunpack.c.l.b16 %v233
    %v1058 = vunpack.c.h.b16 %v233
    %v1059 = vunpack.c.l.b16 %v234
    %v1060 = vunpack.c.h.b16 %v234
    %v1061 = vunpack.c.l.b16 %v235
    %v1062 = vunpack.c.h.b16 %v235
    %v1063 = vunpack.c.l.b16 %v236
    %v1064 = vunpack.c.h.b16 %v236
    %v1065 = vunpack.c.l.b16 %v237
    %v1066 = vunpack.c.h.b16 %v237
    %v1067 = vunpack.c.l.b16 %v238
    %v1068 = vunpack.c.h.b16 %v238
    %v1069 = vunpack.c.l.b16 %v239
    %v1070 = vunpack.c.h.b16 %v239
    %v1071 = vunpack.c.l.b16 %v240
    %v1072 = vunpack.c.h.b16 %v240
    %v1073 = vunpack.c.l.b16 %v241
    %v1074 = vunpack.c.h.b16 %v241
    %v1075 = vunpack.c.l.b16 %v242
    %v1076 = vunpack.c.h.b16 %v242
    %v1077 = vunpack.c.l.b16 %v243
    %v1078 = vunpack.c.h.b16 %v243
    %v1079 = vunpack.c.l.b16 %v244
    %v1080 = vunpack.c.h.b16 %v244
    %v1081 = vunpack.c.l.b16 %v245
    %v1082 = vunpack.c.h.b16 %v245
    %v1083 = vunpack.c.l.b16 %v246
    %v1084 = vunpack.c.h.b16 %v246
    %v1085 = vunpack.c.l.b16 %v247
    %v1086 = vunpack.c.h.b16 %v247
    %v1087 = vunpack.c.l.b16 %v248
    %v1088 = vunpack.c.h.b16 %v248
    %v1089 = vunpack.c.l.b16 %v249
    %v1090 = vunpack.c.h.b16 %v249
    %v1091 = vunpack.c.l.b16 %v250
    %v1092 = vunpack.c.h.b16 %v250
    %v1093 = vunpack.c.l.b16 %v251
    %v1094 = vunpack.c.h.b16 %v251
    %v1095 = vunpack.c.l.b16 %v252
    %v1096 = vunpack.c.h.b16 %v252
    %v1097 = vunpack.c.l.b16 %v253
    %v1098 = vunpack.c.h.b16 %v253
    %v1099 = vunpack.c.l.b16 %v254
    %v1100 = vunpack.c.h.b16 %v254
    %v1101 = vunpack.c.l.b16 %v255
    %v1102 = vunpack.c.h.b16 %v255
    %v1103 = vunpack.c.l.b16 %v256
    %v1104 = vunpack.c.h.b16 %v256
    %v1105 = vunpack.c.l.b16 %v257
    %v1106 = vunpack.c.h.b16 %v257
    %v1107 = vunpack.c.l.b16 %v258
    %v1108 = vunpack.c.h.b16 %v258
    %v1109 = vunpack.c.l.b16 %v259
    %v1110 = vunpack.c.h.b16 %v259
    %v1111 = vunpack.c.l.b16 %v260
    %v1112 = vunpack.c.h.b16 %v260
    %v1113 = vunpack.c.l.b16 %v261
    %v1114 = vunpack.c.h.b16 %v261
    %v1115 = vunpack.c.l.b16 %v262
    %v1116 = vunpack.c.h.b16 %v262
    %v1117 = vunpack.c.l.b16 %v263
    %v1118 = vunpack.c.h.b16 %v263
    %v1119 = vunpack.c.l.b16 %v264
    %v1120 = vunpack.c.h.b16 %v264
    %v1121 = vunpack.c.l.b16 %v265
    %v1122 = vunpack.c.h.b16 %v265
    %v1123 = vunpack.c.l.b16 %v266
    %v1124 = vunpack.c.h.b16 %v266
    %v1125 = vunpack.c.l.b16 %v267
    %v1126 = vunpack.c.h.b16 %v267
    %v1127 = vunpack.c.l.b16 %v268
    %v1128 = vunpack.c.h.b16 %v268
    %v1129 = vunpack.c.l.b16 %v269
    %v1130 = vunpack.c.h.b16 %v269
    %v1131 = vunpack.c.l.b16 %v270
    %v1132 = vunpack.c.h.b16 %v270
    %v1133 = vunpack.c.l.b16 %v271
    %v1134 = vunpack.c.h.b16 %v271
    %v1135 = vunpack.c.l.b16 %v272
    %v1136 = vunpack.c.h.b16 %v272
    %v1137 = vunpack.c.l.b16 %v273
    %v1138 = vunpack.c.h.b16 %v273
    %v1139 = vunpack.c.l.b16 %v274
    %v1140 = vunpack.c.h.b16 %v274
    %v1141 = vunpack.c.l.b16 %v275
    %v1142 = vunpack.c.h.b16 %v275
    %v1143 = vunpack.c.l.b16 %v276
    %v1144 = vunpack.c.h.b16 %v276
    %v1145 = vunpack.c.l.b16 %v277
    %v1146 = vunpack.c.h.b16 %v277
    %v1147 = vunpack.c.l.b16 %v278
    %v1148 = vunpack.c.h.b16 %v278
    %v1149 = vunpack.c.l.b16 %v279
    %v1150 = vunpack.c.h.b16 %v279
    %v1151 = vunpack.c.l.b16 %v280
    %v1152 = vunpack.c.h.b16 %v280
    %v1153 = vunpack.c.l.b16 %v281
    %v1154 = vunpack.c.h.b16 %v281
    %v1155 = vunpack.c.l.b16 %v282
    %v1156 = vunpack.c.h.b16 %v282
    %v1157 = vunpack.c.l.b16 %v283
    %v1158 = vunpack.c.h.b16 %v283
    %v1159 = vunpack.c.l.b16 %v284
    %v1160 = vunpack.c.h.b16 %v284
    %v1161 = vunpack.c.l.b16 %v285
    %v1162 = vunpack.c.h.b16 %v285
    %v1163 = vunpack.c.l.b16 %v286
    %v1164 = vunpack.c.h.b16 %v286
    %v1165 = vunpack.c.l.b16 %v287
    %v1166 = vunpack.c.h.b16 %v287
    %v1167 = vunpack.c.l.b16 %v288
    %v1168 = vunpack.c.h.b16 %v288
    %v1169 = vunpack.c.l.b16 %v289
    %v1170 = vunpack.c.h.b16 %v289
    %v1171 = vunpack.c.l.b16 %v290
    %v1172 = vunpack.c.h.b16 %v290
    %v1173 = vunpack.c.l.b16 %v291
    %v1174 = vunpack.c.h.b16 %v291
    %v1175 = vunpack.c.l.b16 %v292
    %v1176 = vunpack.c.h.b16 %v292
    %v1177 = vunpack.c.l.b16 %v293
    %v1178 = vunpack.c.h.b16 %v293
    %v1179 = vunpack.c.l.b16 %v294
    %v1180 = vunpack.c.h.b16 %v294
    %v1181 = vunpack.c.l.b16 %v295
    %v1182 = vunpack.c.h.b16 %v295
    %v1183 = vunpack.c.l.b16 %v296
    %v1184 = vunpack.c.h.b16 %v296
    %v1185 = vunpack.c.l.b16 %v297
    %v1186 = vunpack.c.h.b16 %v297
    %v1187 = vunpack.c.l.b16 %v298
    %v1188 = vunpack.c.h.b16 %v298
    %v1189 = vunpack.c.l.b16 %v299
    %v1190 = vunpack.c.h.b16 %v299
    %v1191 = vunpack.c.l.b16 %v300
    %v1192 = vunpack.c.h.b16 %v300
    %v1193 = vunpack.c.l.b16 %v301
    %v1194 = vunpack.c.h.b16 %v301
    %v1195 = vunpack.c.l.b16 %v302
    %v1196 = vunpack.c.h.b16 %v302
    %v1197 = vunpack.c.l.b16 %v303
    %v1198 = vunpack.c.h.b16 %v303
    %v1199 = vunpack.c.l.b16 %v304
    %v1200 = vunpack.c.h.b16 %v304
    %v1201 = vunpack.c.l.b16 %v305
    %v1202 = vunpack.c.h.b16 %v305
    %v1203 = vunpack.c.l.b16 %v306
    %v1204 = vunpack.c.h.b16 %v306
    %v1205 = vunpack.c.l.b16 %v307
    %v1206 = vunpack.c.h.b16 %v307
    %v1207 = vunpack.c.l.b16 %v308
    %v1208 = vunpack.c.h.b16 %v308
    %v1209 = vunpack.c.l.b16 %v309
    %v1210 = vunpack.c.h.b16 %v309
    %v1211 = vunpack.c.l.b16 %v310
    %v1212 = vunpack.c.h.b16 %v310
    %v1213 = vunpack.c.l.b16 %v311
    %v1214 = vunpack.c.h.b16 %v311
    %v1215 = vunpack.c.l.b16 %v312
    %v1216 = vunpack.c.h.b16 %v312
    %v1217 = vunpack.c.l.b16 %v313
    %v1218 = vunpack.c.h.b16 %v313
    %v1219 = vunpack.c.l.b16 %v314
    %v1220 = vunpack.c.h.b16 %v314
    %v1221 = vunpack.c.l.b16 %v315
    %v1222 = vunpack.c.h.b16 %v315
    %v1223 = vunpack.c.l.b16 %v316
    %v1224 = vunpack.c.h.b16 %v316
    %v1225 = vunpack.c.l.b16 %v317
    %v1226 = vunpack.c.h.b16 %v317
    %v1227 = vunpack.c.l.b16 %v318
    %v1228 = vunpack.c.h.b16 %v318
    %v1229 = vunpack.c.l.b16 %v319
    %v1230 = vunpack.c.h.b16 %v319
    %v1231 = vunpack.c.l.b16 %v320
    %v1232 = vunpack.c.h.b16 %v320
    %v1233 = vunpack.c.l.b16 %v321
    %v1234 = vunpack.c.h.b16 %v321
    %v1235 = vunpack.c.l.b16 %v322
    %v1236 = vunpack.c.h.b16 %v322
    %v1237 = vunpack.c.l.b16 %v323
    %v1238 = vunpack.c.h.b16 %v323
    %v1239 = vunpack.c.l.b16 %v324
    %v1240 = vunpack.c.h.b16 %v324
    %v1241 = vunpack.c.l.b16 %v325
    %v1242 = vunpack.c.h.b16 %v325
    %v1243 = vunpack.c.l.b16 %v326
    %v1244 = vunpack.c.h.b16 %v326
    %v1245 = vunpack.c.l.b16 %v327
    %v1246 = vunpack.c.h.b16 %v327
    %v1247 = vunpack.c.l.b16 %v328
    %v1248 = vunpack.c.h.b16 %v328
    %v1249 = vunpack.c.l.b16 %v329
    %v1250 = vunpack.c.h.b16 %v329
    %v1251 = vunpack.c.l.b16 %v330
    %v1252 = vunpack.c.h.b16 %v330
    %v1253 = vunpack.c.l.b16 %v331
    %v1254 = vunpack.c.h.b16 %v331
    %v1255 = vunpack.c.l.b16 %v332
    %v1256 = vunpack.c.h.b16 %v332
    %v1257 = vunpack.c.l.b16 %v333
    %v1258 = vunpack.c.h.b16 %v333
    %v1259 = vunpack.c.l.b16 %v334
    %v1260 = vunpack.c.h.b16 %v334
    %v1261 = vunpack.c.l.b16 %v335
    %v1262 = vunpack.c.h.b16 %v335
    %v1263 = vunpack.c.l.b16 %v336
    %v1264 = vunpack.c.h.b16 %v336
    %v1265 = vunpack.c.l.b16 %v337
    %v1266 = vunpack.c.h.b16 %v337
    %v1267 = vunpack.c.l.b16 %v338
    %v1268 = vunpack.c.h.b16 %v338
    %v1269 = vunpack.c.l.b16 %v339
    %v1270 = vunpack.c.h.b16 %v339
    %v1271 = vunpack.c.l.b16 %v340
    %v1272 = vunpack.c.h.b16 %v340
    %v1273 = vunpack.c.l.b16 %v341
    %v1274 = vunpack.c.h.b16 %v341
    %v1275 = vunpack.c.l.b16 %v342
    %v1276 = vunpack.c.h.b16 %v342
    %v1277 = vunpack.c.l.b16 %v343
    %v1278 = vunpack.c.h.b16 %v343
    %v1279 = vunpack.c.l.b16 %v344
    %v1280 = vunpack.c.h.b16 %v344
    %v1281 = vunpack.c.l.b16 %v345
    %v1282 = vunpack.c.h.b16 %v345
    %v1283 = vunpack.c.l.b16 %v346
    %v1284 = vunpack.c.h.b16 %v346
    %v1285 = vunpack.c.l.b16 %v347
    %v1286 = vunpack.c.h.b16 %v347
    %v1287 = vunpack.c.l.b16 %v348
    %v1288 = vunpack.c.h.b16 %v348
    %v1289 = vunpack.c.l.b16 %v349
    %v1290 = vunpack.c.h.b16 %v349
    %v1291 = vunpack.c.l.b16 %v350
    %v1292 = vunpack.c.h.b16 %v350
    %v1293 = vunpack.c.l.b16 %v351
    %v1294 = vunpack.c.h.b16 %v351
    %v1295 = vunpack.c.l.b16 %v352
    %v1296 = vunpack.c.h.b16 %v352
    %v1297 = vunpack.c.l.b16 %v353
    %v1298 = vunpack.c.h.b16 %v353
    %v1299 = vunpack.c.l.b16 %v354
    %v1300 = vunpack.c.h.b16 %v354
    %v1301 = vunpack.c.l.b16 %v355
    %v1302 = vunpack.c.h.b16 %v355
    %v1303 = vunpack.c.l.b16 %v356
    %v1304 = vunpack.c.h.b16 %v356
    %v1305 = vunpack.c.l.b16 %v357
    %v1306 = vunpack.c.h.b16 %v357
    %v1307 = vunpack.c.l.b16 %v358
    %v1308 = vunpack.c.h.b16 %v358
    %v1309 = vunpack.c.l.b16 %v359
    %v1310 = vunpack.c.h.b16 %v359
    %v1311 = vunpack.c.l.b16 %v360
    %v1312 = vunpack.c.h.b16 %v360
    %v1313 = vunpack.c.l.b16 %v361
    %v1314 = vunpack.c.h.b16 %v361
    %v1315 = vunpack.c.l.b16 %v362
    %v1316 = vunpack.c.h.b16 %v362
    %v1317 = vunpack.c.l.b16 %v363
    %v1318 = vunpack.c.h.b16 %v363
    %v1319 = vunpack.c.l.b16 %v364
    %v1320 = vunpack.c.h.b16 %v364
    %v1321 = vunpack.c.l.b16 %v365
    %v1322 = vunpack.c.h.b16 %v365
    %v1323 = vunpack.c.l.b16 %v366
    %v1324 = vunpack.c.h.b16 %v366
    %v1325 = vunpack.c.l.b16 %v367
    %v1326 = vunpack.c.h.b16 %v367
    %v1327 = vunpack.c.l.b16 %v368
    %v1328 = vunpack.c.h.b16 %v368
    %v1329 = vunpack.c.l.b16 %v369
    %v1330 = vunpack.c.h.b16 %v369
    %v1331 = vunpack.c.l.b16 %v370
    %v1332 = vunpack.c.h.b16 %v370
    %v1333 = vunpack.c.l.b16 %v371
    %v1334 = vunpack.c.h.b16 %v371
    %v1335 = vunpack.c.l.b16 %v372
    %v1336 = vunpack.c.h.b16 %v372
    %v1337 = vunpack.c.l.b16 %v373
    %v1338 = vunpack.c.h.b16 %v373
    %v1339 = vunpack.c.l.b16 %v374
    %v1340 = vunpack.c.h.b16 %v374
    %v1341 = vunpack.c.l.b16 %v375
    %v1342 = vunpack.c.h.b16 %v375
    %v1343 = vunpack.c.l.b16 %v376
    %v1344 = vunpack.c.h.b16 %v376
    %v1345 = vunpack.c.l.b16 %v377
    %v1346 = vunpack.c.h.b16 %v377
    %v1347 = vunpack.c.l.b16 %v378
    %v1348 = vunpack.c.h.b16 %v378
    %v1349 = vunpack.c.l.b16 %v379
    %v1350 = vunpack.c.h.b16 %v379
    %v1351 = vunpack.c.l.b16 %v380
    %v1352 = vunpack.c.h.b16 %v380
    %v1353 = vunpack.c.l.b16 %v381
    %v1354 = vunpack.c.h.b16 %v381
    %v1355 = vunpack.c.l.b16 %v382
    %v1356 = vunpack.c.h.b16 %v382
    %v1357 = vunpack.c.l.b16 %v383
    %v1358 = vunpack.c.h.b16 %v383
    %v1359 = vunpack.c.l.b16 %v384
    %v1360 = vunpack.c.h.b16 %v384
    %v1361 = vunpack.c.l.b16 %v385
    %v1362 = vunpack.c.h.b16 %v385
    %v1363 = vunpack.c.l.b16 %v386
    %v1364 = vunpack.c.h.b16 %v386
    %v1365 = vunpack.c.l.b16 %v387
    %v1366 = vunpack.c.h.b16 %v387
    %v1367 = vunpack.c.l.b16 %v388
    %v1368 = vunpack.c.h.b16 %v388
    %v1369 = vunpack.c.l.b16 %v389
    %v1370 = vunpack.c.h.b16 %v389
    %v1371 = vunpack.c.l.b16 %v390
    %v1372 = vunpack.c.h.b16 %v390
    %v1373 = vunpack.c.l.b16 %v391
    %v1374 = vunpack.c.h.b16 %v391
    %v1375 = vunpack.c.l.b16 %v392
    %v1376 = vunpack.c.h.b16 %v392
    %v1377 = vunpack.c.l.b16 %v393
    %v1378 = vunpack.c.h.b16 %v393
    %v1379 = vunpack.c.l.b16 %v394
    %v1380 = vunpack.c.h.b16 %v394
    %v1381 = vunpack.c.l.b16 %v395
    %v1382 = vunpack.c.h.b16 %v395
    %v1383 = vunpack.c.l.b16 %v396
    %v1384 = vunpack.c.h.b16 %v396
    %v1385 = vunpack.c.l.b16 %v397
    %v1386 = vunpack.c.h.b16 %v397
    %v1387 = vunpack.c.l.b16 %v398
    %v1388 = vunpack.c.h.b16 %v398
    %v1389 = vunpack.c.l.b16 %v399
    %v1390 = vunpack.c.h.b16 %v399
    %v1391 = vunpack.c.l.b16 %v400
    %v1392 = vunpack.c.h.b16 %v400
    %v1393 = vunpack.c.l.b16 %v401
    %v1394 = vunpack.c.h.b16 %v401
    %v1395 = vunpack.c.l.b16 %v402
    %v1396 = vunpack.c.h.b16 %v402
    %v1397 = vunpack.c.l.b16 %v403
    %v1398 = vunpack.c.h.b16 %v403
    %v1399 = vunpack.c.l.b16 %v404
    %v1400 = vunpack.c.h.b16 %v404
    %v1401 = vunpack.c.l.b16 %v405
    %v1402 = vunpack.c.h.b16 %v405
    %v1403 = vunpack.c.l.b16 %v406
    %v1404 = vunpack.c.h.b16 %v406
    %v1405 = vunpack.c.l.b16 %v407
    %v1406 = vunpack.c.h.b16 %v407
    %v1407 = vunpack.c.l.b16 %v408
    %v1408 = vunpack.c.h.b16 %v408
    %v1409 = vunpack.c.l.b16 %v409
    %v1410 = vunpack.c.h.b16 %v409
    %v1411 = vunpack.c.l.b16 %v410
    %v1412 = vunpack.c.h.b16 %v410
    %v1413 = vunpack.c.l.b16 %v411
    %v1414 = vunpack.c.h.b16 %v411
    %v1415 = vunpack.c.l.b16 %v412
    %v1416 = vunpack.c.h.b16 %v412
    %v1417 = vunpack.c.l.b16 %v413
    %v1418 = vunpack.c.h.b16 %v413
    %v1419 = vunpack.c.l.b16 %v414
    %v1420 = vunpack.c.h.b16 %v414
    %v1421 = vunpack.c.l.b16 %v415
    %v1422 = vunpack.c.h.b16 %v415
    %v1423 = vunpack.c.l.b16 %v416
    %v1424 = vunpack.c.h.b16 %v416
    %v1425 = vunpack.c.l.b16 %v417
    %v1426 = vunpack.c.h.b16 %v417
    %v1427 = vunpack.c.l.b16 %v418
    %v1428 = vunpack.c.h.b16 %v418
    %v1429 = vunpack.c.l.b16 %v419
    %v1430 = vunpack.c.h.b16 %v419
    %v1431 = vunpack.c.l.b16 %v420
    %v1432 = vunpack.c.h.b16 %v420
    %v1433 = vunpack.c.l.b16 %v421
    %v1434 = vunpack.c.h.b16 %v421
    %v1435 = vunpack.c.l.b16 %v422
    %v1436 = vunpack.c.h.b16 %v422
    %v1437 = vunpack.c.l.b16 %v423
    %v1438 = vunpack.c.h.b16 %v423
    %v1439 = vunpack.c.l.b16 %v424
    %v1440 = vunpack.c.h.b16 %v424
    %v1441 = vunpack.c.l.b16 %v425
    %v1442 = vunpack.c.h.b16 %v425
    %v1443 = vunpack.c.l.b16 %v426
    %v1444 = vunpack.c.h.b16 %v426
    %v1445 = vunpack.c.l.b16 %v427
    %v1446 = vunpack.c.h.b16 %v427
    %v1447 = vunpack.c.l.b16 %v428
    %v1448 = vunpack.c.h.b16 %v428
    %v1449 = vunpack.c.l.b16 %v429
    %v1450 = vunpack.c.h.b16 %v429
    %v1451 = vunpack.c.l.b16 %v430
    %v1452 = vunpack.c.h.b16 %v430
    %v1453 = vunpack.c.l.b16 %v431
    %v1454 = vunpack.c.h.b16 %v431
    %v1455 = vunpack.c.l.b16 %v432
    %v1456 = vunpack.c.h.b16 %v432
    %v1457 = vunpack.c.l.b16 %v433
    %v1458 = vunpack.c.h.b16 %v433
    %v1459 = vunpack.c.l.b16 %v434
    %v1460 = vunpack.c.h.b16 %v434
    %v1461 = vunpack.c.l.b16 %v435
    %v1462 = vunpack.c.h.b16 %v435
    %v1463 = vunpack.c.l.b16 %v436
    %v1464 = vunpack.c.h.b16 %v436
    %v1465 = vunpack.c.l.b16 %v437
    %v1466 = vunpack.c.h.b16 %v437
    %v1467 = vunpack.c.l.b16 %v438
    %v1468 = vunpack.c.h.b16 %v438
    %v1469 = vunpack.c.l.b16 %v439
    %v1470 = vunpack.c.h.b16 %v439
    %v1471 = vunpack.c.l.b16 %v440
    %v1472 = vunpack.c.h.b16 %v440
    %v1473 = vunpack.c.l.b16 %v441
    %v1474 = vunpack.c.h.b16 %v441
    %v1475 = vunpack.c.l.b16 %v442
    %v1476 = vunpack.c.h.b16 %v442
    %v1477 = vunpack.c.l.b16 %v443
    %v1478 = vunpack.c.h.b16 %v443
    %v1479 = vunpack.c.l.b16 %v444
    %v1480 = vunpack.c.h.b16 %v444
    %v1481 = vunpack.c.l.b16 %v445
    %v1482 = vunpack.c.h.b16 %v445
    %v1483 = vunpack.c.l.b16 %v446
    %v1484 = vunpack.c.h.b16 %v446
    %v1485 = vunpack.c.l.b16 %v447
    %v1486 = vunpack.c.h.b16 %v447
    %v1487 = vunpack.c.l.b16 %v448
    %v1488 = vunpack.c.h.b16 %v448
    %v1489 = vunpack.c.l.b16 %v449
    %v1490 = vunpack.c.h.b16 %v449
    %v1491 = vunpack.c.l.b16 %v450
    %v1492 = vunpack.c.h.b16 %v450
    %v1493 = vunpack.c.l.b16 %v451
    %v1494 = vunpack.c.h.b16 %v451
    %v1495 = vunpack.c.l.b16 %v452
    %v1496 = vunpack.c.h.b16 %v452
    %v1497 = vunpack.c.l.b16 %v453
    %v1498 = vunpack.c.h.b16 %v453
    %v1499 = vunpack.c.l.b16 %v454
    %v1500 = vunpack.c.h.b16 %v454
    %v1501 = vunpack.c.l.b16 %v455
    %v1502 = vunpack.c.h.b16 %v455
    %v1503 = vunpack.c.l.b16 %v456
    %v1504 = vunpack.c.h.b16 %v456
    %v1505 = vunpack.c.l.b16 %v457
    %v1506 = vunpack.c.h.b16 %v457
    %v1507 = vunpack.c.l.b16 %v458
    %v1508 = vunpack.c.h.b16 %v458
    %v1509 = vunpack.c.l.b16 %v459
    %v1510 = vunpack.c.h.b16 %v459
    %v1511 = vunpack.c.l.b16 %v460
    %v1512 = vunpack.c.h.b16 %v460
    %v1513 = vunpack.c.l.b16 %v461
    %v1514 = vunpack.c.h.b16 %v461
    %v1515 = vunpack.c.l.b16 %v462
    %v1516 = vunpack.c.h.b16 %v462
    %v1517 = vunpack.c.l.b16 %v463
    %v1518 = vunpack.c.h.b16 %v463
    %v1519 = vunpack.c.l.b16 %v464
    %v1520 = vunpack.c.h.b16 %v464
    %v1521 = vunpack.c.l.b16 %v465
    %v1522 = vunpack.c.h.b16 %v465
    %v1523 = vunpack.c.l.b16 %v466
    %v1524 = vunpack.c.h.b16 %v466
    %v1525 = vunpack.c.l.b16 %v467
    %v1526 = vunpack.c.h.b16 %v467
    %v1527 = vunpack.c.l.b16 %v468
    %v1528 = vunpack.c.h.b16 %v468
    %v1529 = vunpack.c.l.b16 %v469
    %v1530 = vunpack.c.h.b16 %v469
    %v1531 = vunpack.c.l.b16 %v470
    %v1532 = vunpack.c.h.b16 %v470
    %v1533 = vunpack.c.l.b16 %v471
    %v1534 = vunpack.c.h.b16 %v471
    %v1535 = vunpack.c.l.b16 %v472
    %v1536 = vunpack.c.h.b16 %v472
    %v1537 = vunpack.c.l.b16 %v473
    %v1538 = vunpack.c.h.b16 %v473
    %v1539 = vunpack.c.l.b16 %v474
    %v1540 = vunpack.c.h.b16 %v474
    %v1541 = vunpack.c.l.b16 %v475
    %v1542 = vunpack.c.h.b16 %v475
    %v1543 = vunpack.c.l.b16 %v476
    %v1544 = vunpack.c.h.b16 %v476
    %v1545 = vunpack.c.l.b16 %v477
    %v1546 = vunpack.c.h.b16 %v477
    %v1547 = vunpack.c.l.b16 %v478
    %v1548 = vunpack.c.h.b16 %v478
    %v1549 = vunpack.c.l.b16 %v479
    %v1550 = vunpack.c.h.b16 %v479
    %v1551 = vunpack.c.l.b16 %v480
    %v1552 = vunpack.c.h.b16 %v480
    %v1553 = vunpack.c.l.b16 %v481
    %v1554 = vunpack.c.h.b16 %v481
    %v1555 = vunpack.c.l.b16 %v482
    %v1556 = vunpack.c.h.b16 %v482
    %v1557 = vunpack.c.l.b16 %v483
    %v1558 = vunpack.c.h.b16 %v483
    %v1559 = vunpack.c.l.b16 %v484
    %v1560 = vunpack.c.h.b16 %v484
    %v1561 = vunpack.c.l.b16 %v485
    %v1562 = vunpack.c.h.b16 %v485
    %v1563 = vunpack.c.l.b16 %v486
    %v1564 = vunpack.c.h.b16 %v486
    %v1565 = vunpack.c.l.b16 %v487
    %v1566 = vunpack.c.h.b16 %v487
    %v1567 = vunpack.c.l.b16 %v488
    %v1568 = vunpack.c.h.b16 %v488
    %v1569 = vunpack.c.l.b16 %v489
    %v1570 = vunpack.c.h.b16 %v489
    %v1571 = vunpack.c.l.b16 %v490
    %v1572 = vunpack.c.h.b16 %v490
    %v1573 = vunpack.c.l.b16 %v491
    %v1574 = vunpack.c.h.b16 %v491
    %v1575 = vunpack.c.l.b16 %v492
    %v1576 = vunpack.c.h.b16 %v492
    %v1577 = vunpack.c.l.b16 %v493
    %v1578 = vunpack.c.h.b16 %v493
    %v1579 = vunpack.c.l.b16 %v494
    %v1580 = vunpack.c.h.b16 %v494
    %v1581 = vunpack.c.l.b16 %v495
    %v1582 = vunpack.c.h.b16 %v495
    %v1583 = vunpack.c.l.b16 %v496
    %v1584 = vunpack.c.h.b16 %v496
    %v1585 = vunpack.c.l.b16 %v497
    %v1586 = vunpack.c.h.b16 %v497
    %v1587 = vunpack.c.l.b16 %v498
    %v1588 = vunpack.c.h.b16 %v498
    %v1589 = vunpack.c.l.b16 %v499
    %v1590 = vunpack.c.h.b16 %v499
    %v1591 = vunpack.c.l.b16 %v500
    %v1592 = vunpack.c.h.b16 %v500
    %v1593 = vunpack.c.l.b16 %v501
    %v1594 = vunpack.c.h.b16 %v501
    %v1595 = vunpack.c.l.b16 %v502
    %v1596 = vunpack.c.h.b16 %v502
    %v1597 = vunpack.c.l.b16 %v503
    %v1598 = vunpack.c.h.b16 %v503
    %v1599 = vunpack.c.l.b16 %v504
    %v1600 = vunpack.c.h.b16 %v504
    %v1601 = vunpack.c.l.b16 %v505
    %v1602 = vunpack.c.h.b16 %v505
    %v1603 = vunpack.c.l.b16 %v506
    %v1604 = vunpack.c.h.b16 %v506
    %v1605 = vunpack.c.l.b16 %v507
    %v1606 = vunpack.c.h.b16 %v507
    %v1607 = vunpack.c.l.b16 %v508
    %v1608 = vunpack.c.h.b16 %v508
    %v1609 = vunpack.c.l.b16 %v509
    %v1610 = vunpack.c.h.b16 %v509
    %v1611 = vunpack.c.l.b16 %v510
    %v1612 = vunpack.c.h.b16 %v510
    %v1613 = vunpack.c.l.b16 %v511
    %v1614 = vunpack.c.h.b16 %v511
    %v1615 = vunpack.c.l.b16 %v512
    %v1616 = vunpack.c.h.b16 %v512
    %v1617 = vunpack.c.l.b16 %v513
    %v1618 = vunpack.c.h.b16 %v513
    %v1619 = vunpack.c.l.b16 %v514
    %v1620 = vunpack.c.h.b16 %v514
    %v1621 = vunpack.c.l.b16 %v515
    %v1622 = vunpack.c.h.b16 %v515
    %v1623 = vunpack.c.l.b16 %v516
    %v1624 = vunpack.c.h.b16 %v516
    %v1625 = vunpack.c.l.b16 %v517
    %v1626 = vunpack.c.h.b16 %v517
    %v1627 = vunpack.c.l.b16 %v518
    %v1628 = vunpack.c.h.b16 %v518
    %v1629 = vunpack.c.l.b16 %v519
    %v1630 = vunpack.c.h.b16 %v519
    %v1631 = vunpack.c.l.b16 %v520
    %v1632 = vunpack.c.h.b16 %v520
    %v1633 = vunpack.c.l.b16 %v521
    %v1634 = vunpack.c.h.b16 %v521
    %v1635 = vunpack.c.l.b16 %v522
    %v1636 = vunpack.c.h.b16 %v522
    %v1637 = vunpack.c.l.b16 %v523
    %v1638 = vunpack.c.h.b16 %v523
    %v1639 = vunpack.c.l.b16 %v524
    %v1640 = vunpack.c.h.b16 %v524
    %v1641 = vunpack.c.l.b16 %v525
    %v1642 = vunpack.c.h.b16 %v525
    %v1643 = vunpack.c.l.b16 %v526
    %v1644 = vunpack.c.h.b16 %v526
    %v1645 = vunpack.c.l.b16 %v527
    %v1646 = vunpack.c.h.b16 %v527
    %v1647 = vunpack.c.l.b16 %v528
    %v1648 = vunpack.c.h.b16 %v528
    %v1649 = vunpack.c.l.b16 %v529
    %v1650 = vunpack.c.h.b16 %v529
    %v1651 = vunpack.c.l.b16 %v530
    %v1652 = vunpack.c.h.b16 %v530
    %v1653 = vunpack.c.l.b16 %v531
    %v1654 = vunpack.c.h.b16 %v531
    %v1655 = vunpack.c.l.b16 %v532
    %v1656 = vunpack.c.h.b16 %v532
    %v1657 = vunpack.c.l.b16 %v533
    %v1658 = vunpack.c.h.b16 %v533
    %v1659 = vunpack.c.l.b16 %v534
    %v1660 = vunpack.c.h.b16 %v534
    %v1661 = vunpack.c.l.b16 %v535
    %v1662 = vunpack.c.h.b16 %v535
    %v1663 = vunpack.c.l.b16 %v536
    %v1664 = vunpack.c.h.b16 %v536
    %v1665 = vunpack.c.l.b16 %v537
    %v1666 = vunpack.c.h.b16 %v537
    %v1667 = vunpack.c.l.b16 %v538
    %v1668 = vunpack.c.h.b16 %v538
    %v1669 = vunpack.c.l.b16 %v539
    %v1670 = vunpack.c.h.b16 %v539
    %v1671 = vunpack.c.l.b16 %v540
    %v1672 = vunpack.c.h.b16 %v540
    %v1673 = vunpack.c.l.b16 %v541
    %v1674 = vunpack.c.h.b16 %v541
    %v1675 = vunpack.c.l.b16 %v542
    %v1676 = vunpack.c.h.b16 %v542
    %v1677 = vunpack.c.l.b16 %v543
    %v1678 = vunpack.c.h.b16 %v543
    %v1679 = vunpack.c.l.b16 %v544
    %v1680 = vunpack.c.h.b16 %v544
    %v1681 = vunpack.c.l.b16 %v545
    %v1682 = vunpack.c.h.b16 %v545
    %v1683 = vunpack.c.l.b16 %v546
    %v1684 = vunpack.c.h.b16 %v546
    %v1685 = vunpack.c.l.b16 %v547
    %v1686 = vunpack.c.h.b16 %v547
    %v1687 = vunpack.c.l.b16 %v548
    %v1688 = vunpack.c.h.b16 %v548
    %v1689 = vunpack.c.l.b16 %v549
    %v1690 = vunpack.c.h.b16 %v549
    %v1691 = vunpack.c.l.b16 %v550
    %v1692 = vunpack.c.h.b16 %v550
    %v1693 = vunpack.c.l.b16 %v551
    %v1694 = vunpack.c.h.b16 %v551
    %v1695 = vunpack.c.l.b16 %v552
    %v1696 = vunpack.c.h.b16 %v552
    %v1697 = vunpack.c.l.b16 %v553
    %v1698 = vunpack.c.h.b16 %v553
    %v1699 = vunpack.c.l.b16 %v554
    %v1700 = vunpack.c.h.b16 %v554
    %v1701 = vunpack.c.l.b16 %v555
    %v1702 = vunpack.c.h.b16 %v555
    %v1703 = vunpack.c.l.b16 %v556
    %v1704 = vunpack.c.h.b16 %v556
    %v1705 = vunpack.c.l.b16 %v557
    %v1706 = vunpack.c.h.b16 %v557
    %v1707 = vunpack.c.l.b16 %v558
    %v1708 = vunpack.c.h.b16 %v558
    %v1709 = vunpack.c.l.b16 %v559
    %v1710 = vunpack.c.h.b16 %v559
    %v1711 = vunpack.c.l.b16 %v560
    %v1712 = vunpack.c.h.b16 %v560
    %v1713 = vunpack.c.l.b16 %v561
    %v1714 = vunpack.c.h.b16 %v561
    %v1715 = vunpack.c.l.b16 %v562
    %v1716 = vunpack.c.h.b16 %v562
    %v1717 = vunpack.c.l.b16 %v563
    %v1718 = vunpack.c.h.b16 %v563
    %v1719 = vunpack.c.l.b16 %v564
    %v1720 = vunpack.c.h.b16 %v564
    %v1721 = vunpack.c.l.b16 %v565
    %v1722 = vunpack.c.h.b16 %v565
    %v1723 = vunpack.c.l.b16 %v566
    %v1724 = vunpack.c.h.b16 %v566
    %v1725 = vunpack.c.l.b16 %v567
    %v1726 = vunpack.c.h.b16 %v567
    %v1727 = vunpack.c.l.b16 %v568
    %v1728 = vunpack.c.h.b16 %v568
    %v1729 = vunpack.c.l.b16 %v569
    %v1730 = vunpack.c.h.b16 %v569
    %v1731 = vunpack.c.l.b16 %v570
    %v1732 = vunpack.c.h.b16 %v570
    %v1733 = vunpack.c.l.b16 %v571
    %v1734 = vunpack.c.h.b16 %v571
    %v1735 = vunpack.c.l.b16 %v572
    %v1736 = vunpack.c.h.b16 %v572
    %v1737 = vpack.c.b16 %v971, %v969
    %v1738 = vpack.c.b16 %v972, %v970
    %v1739 = vpack.c.b16 %v975, %v973
    %v1740 = vpack.c.b16 %v976, %v974
    %v1741 = vpack.c.b16 %v979, %v977
    %v1742 = vpack.c.b16 %v980, %v978
    %v1743 = vpack.c.b16 %v983, %v981
    %v1744 = vpack.c.b16 %v984, %v982
    %v1745 = vpack.c.b16 %v987, %v985
    %v1746 = vpack.c.b16 %v988, %v986
    %v1747 = vpack.c.b16 %v991, %v989
    %v1748 = vpack.c.b16 %v992, %v990
    %v1749 = vpack.c.b16 %v995, %v993
    %v1750 = vpack.c.b16 %v996, %v994
    %v1751 = vpack.c.b16 %v999, %v997
    %v1752 = vpack.c.b16 %v1000, %v998
    %v1753 = vpack.c.b16 %v1003, %v1001
    %v1754 = vpack.c.b16 %v1004, %v1002
    %v1755 = vpack.c.b16 %v1007, %v1005
    %v1756 = vpack.c.b16 %v1008, %v1006
    %v1757 = vpack.c.b16 %v1011, %v1009
    %v1758 = vpack.c.b16 %v1012, %v1010
    %v1759 = vpack.c.b16 %v1015, %v1013
    %v1760 = vpack.c.b16 %v1016, %v1014
    %v1761 = vpack.c.b16 %v1019, %v1017
    %v1762 = vpack.c.b16 %v1020, %v1018
    %v1763 = vpack.c.b16 %v1023, %v1021
    %v1764 = vpack.c.b16 %v1024, %v1022
    %v1765 = vpack.c.b16 %v1027, %v1025
    %v1766 = vpack.c.b16 %v1028, %v1026
    %v1767 = vpack.c.b16 %v1031, %v1029
    %v1768 = vpack.c.b16 %v1032, %v1030
    %v1769 = vpack.c.b16 %v1035, %v1033
    %v1770 = vpack.c.b16 %v1036, %v1034
    %v1771 = vpack.c.b16 %v1039, %v1037
    %v1772 = vpack.c.b16 %v1040, %v1038
    %v1773 = vpack.c.b16 %v1043, %v1041
    %v1774 = vpack.c.b16 %v1044, %v1042
    %v1775 = vpack.c.b16 %v1047, %v1045
    %v1776 = vpack.c.b16 %v1048, %v1046
    %v1777 = vpack.c.b16 %v1051, %v1049
    %v1778 = vpack.c.b16 %v1052, %v1050
    %v1779 = vpack.c.b16 %v1055, %v1053
    %v1780 = vpack.c.b16 %v1056, %v1054
    %v1781 = vpack.c.b16 %v1059, %v1057
    %v1782 = vpack.c.b16 %v1060, %v1058
    %v1783 = vpack.c.b16 %v1063, %v1061
    %v1784 = vpack.c.b16 %v1064, %v1062
    %v1785 = vpack.c.b16 %v1067, %v1065
    %v1786 = vpack.c.b16 %v1068, %v1066
    %v1787 = vpack.c.b16 %v1071, %v1069
    %v1788 = vpack.c.b16 %v1072, %v1070
    %v1789 = vpack.c.b16 %v1075, %v1073
    %v1790 = vpack.c.b16 %v1076, %v1074
    %v1791 = vpack.c.b16 %v1079, %v1077
    %v1792 = vpack.c.b16 %v1080, %v1078
    %v1793 = vpack.c.b16 %v1083, %v1081
    %v1794 = vpack.c.b16 %v1084, %v1082
    %v1795 = vpack.c.b16 %v1087, %v1085
    %v1796 = vpack.c.b16 %v1088, %v1086
    %v1797 = vpack.c.b16 %v1091, %v1089
    %v1798 = vpack.c.b16 %v1092, %v1090
    %v1799 = vpack.c.b16 %v1095, %v1093
    %v1800 = vpack.c.b16 %v1096, %v1094
    %v1801 = vpack.c.b16 %v1099, %v1097
    %v1802 = vpack.c.b16 %v1100, %v1098
    %v1803 = vpack.c.b16 %v1103, %v1101
    %v1804 = vpack.c.b16 %v1104, %v1102
    %v1805 = vpack.c.b16 %v1107, %v1105
    %v1806 = vpack.c.b16 %v1108, %v1106
    %v1807 = vpack.c.b16 %v1111, %v1109
    %v1808 = vpack.c.b16 %v1112, %v1110
    %v1809 = vpack.c.b16 %v1115, %v1113
    %v1810 = vpack.c.b16 %v1116, %v1114
    %v1811 = vpack.c.b16 %v1119, %v1117
    %v1812 = vpack.c.b16 %v1120, %v1118
    %v1813 = vpack.c.b16 %v1123, %v1121
    %v1814 = vpack.c.b16 %v1124, %v1122
    %v1815 = vpack.c.b16 %v1127, %v1125
    %v1816 = vpack.c.b16 %v1128, %v1126
    %v1817 = vpack.c.b16 %v1131, %v1129
    %v1818 = vpack.c.b16 %v1132, %v1130
    %v1819 = vpack.c.b16 %v1135, %v1133
    %v1820 = vpack.c.b16 %v1136, %v1134
    %v1821 = vpack.c.b16 %v1139, %v1137
    %v1822 = vpack.c.b16 %v1140, %v1138
    %v1823 = vpack.c.b16 %v1143, %v1141
    %v1824 = vpack.c.b16 %v1144, %v1142
    %v1825 = vpack.c.b16 %v1147, %v1145
    %v1826 = vpack.c.b16 %v1148, %v1146
    %v1827 = vpack.c.b16 %v1151, %v1149
    %v1828 = vpack.c.b16 %v1152, %v1150
    %v1829 = vpack.c.b16 %v1155, %v1153
    %v1830 = vpack.c.b16 %v1156, %v1154
    %v1831 = vpack.c.b16 %v1159, %v1157
    %v1832 = vpack.c.b16 %v1160, %v1158
    %v1833 = vpack.c.b16 %v1163, %v1161
    %v1834 = vpack.c.b16 %v1164, %v1162
    %v1835 = vpack.c.b16 %v1167, %v1165
    %v1836 = vpack.c.b16 %v1168, %v1166
    %v1837 = vpack.c.b16 %v1171, %v1169
    %v1838 = vpack.c.b16 %v1172, %v1170
    %v1839 = vpack.c.b16 %v1175, %v1173
    %v1840 = vpack.c.b16 %v1176, %v1174
    %v1841 = vpack.c.b16 %v1179, %v1177
    %v1842 = vpack.c.b16 %v1180, %v1178
    %v1843 = vpack.c.b16 %v1183, %v1181
    %v1844 = vpack.c.b16 %v1184, %v1182
    %v1845 = vpack.c.b16 %v1187, %v1185
    %v1846 = vpack.c.b16 %v1188, %v1186
    %v1847 = vpack.c.b16 %v1191, %v1189
    %v1848 = vpack.c.b16 %v1192, %v1190
    %v1849 = vpack.c.b16 %v1195, %v1193
    %v1850 = vpack.c.b16 %v1196, %v1194
    %v1851 = vpack.c.b16 %v1199, %v1197
    %v1852 = vpack.c.b16 %v1200, %v1198
    %v1853 = vpack.c.b16 %v1203, %v1201
    %v1854 = vpack.c.b16 %v1204, %v1202
    %v1855 = vpack.c.b16 %v1207, %v1205
    %v1856 = vpack.c.b16 %v1208, %v1206
    %v1857 = vpack.c.b16 %v1211, %v1209
    %v1858 = vpack.c.b16 %v1212, %v1210
    %v1859 = vpack.c.b16 %v1215, %v1213
    %v1860 = vpack.c.b16 %v1216, %v1214
    %v1861 = vpack.c.b16 %v1219, %v1217
    %v1862 = vpack.c.b16 %v1220, %v1218
    %v1863 = vpack.c.b16 %v1223, %v1221
    %v1864 = vpack.c.b16 %v1224, %v1222
    %v1865 = vpack.c.b16 %v1227, %v1225
    %v1866 = vpack.c.b16 %v1228, %v1226
    %v1867 = vpack.c.b16 %v1231, %v1229
    %v1868 = vpack.c.b16 %v1232, %v1230
    %v1869 = vpack.c.b16 %v1235, %v1233
    %v1870 = vpack.c.b16 %v1236, %v1234
    %v1871 = vpack.c.b16 %v1239, %v1237
    %v1872 = vpack.c.b16 %v1240, %v1238
    %v1873 = vpack.c.b16 %v1243, %v1241
    %v1874 = vpack.c.b16 %v1244, %v1242
    %v1875 = vpack.c.b16 %v1247, %v1245
    %v1876 = vpack.c.b16 %v1248, %v1246
    %v1877 = vpack.c.b16 %v1251, %v1249
    %v1878 = vpack.c.b16 %v1252, %v1250
    %v1879 = vpack.c.b16 %v1255, %v1253
    %v1880 = vpack.c.b16 %v1256, %v1254
    %v1881 = vpack.c.b16 %v1259, %v1257
    %v1882 = vpack.c.b16 %v1260, %v1258
    %v1883 = vpack.c.b16 %v1263, %v1261
    %v1884 = vpack.c.b16 %v1264, %v1262
    %v1885 = vpack.c.b16 %v1267, %v1265
    %v1886 = vpack.c.b16 %v1268, %v1266
    %v1887 = vpack.c.b16 %v1271, %v1269
    %v1888 = vpack.c.b16 %v1272, %v1270
    %v1889 = vpack.c.b16 %v1275, %v1273
    %v1890 = vpack.c.b16 %v1276, %v1274
    %v1891 = vpack.c.b16 %v1279, %v1277
    %v1892 = vpack.c.b16 %v1280, %v1278
    %v1893 = vpack.c.b16 %v1283, %v1281
    %v1894 = vpack.c.b16 %v1284, %v1282
    %v1895 = vpack.c.b16 %v1287, %v1285
    %v1896 = vpack.c.b16 %v1288, %v1286
    %v1897 = vpack.c.b16 %v1291, %v1289
    %v1898 = vpack.c.b16 %v1292, %v1290
    %v1899 = vpack.c.b16 %v1295, %v1293
    %v1900 = vpack.c.b16 %v1296, %v1294
    %v1901 = vpack.c.b16 %v1299, %v1297
    %v1902 = vpack.c.b16 %v1300, %v1298
    %v1903 = vpack.c.b16 %v1303, %v1301
    %v1904 = vpack.c.b16 %v1304, %v1302
    %v1905 = vpack.c.b16 %v1307, %v1305
    %v1906 = vpack.c.b16 %v1308, %v1306
    %v1907 = vpack.c.b16 %v1311, %v1309
    %v1908 = vpack.c.b16 %v1312, %v1310
    %v1909 = vpack.c.b16 %v1315, %v1313
    %v1910 = vpack.c.b16 %v1316, %v1314
    %v1911 = vpack.c.b16 %v1319, %v1317
    %v1912 = vpack.c.b16 %v1320, %v1318
    %v1913 = vpack.c.b16 %v1323, %v1321
    %v1914 = vpack.c.b16 %v1324, %v1322
    %v1915 = vpack.c.b16 %v1327, %v1325
    %v1916 = vpack.c.b16 %v1328, %v1326
    %v1917 = vpack.c.b16 %v1331, %v1329
    %v1918 = vpack.c.b16 %v1332, %v1330
    %v1919 = vpack.c.b16 %v1335, %v1333
    %v1920 = vpack.c.b16 %v1336, %v1334
    %v1921 = vpack.c.b16 %v1339, %v1337
    %v1922 = vpack.c.b16 %v1340, %v1338
    %v1923 = vpack.c.b16 %v1343, %v1341
    %v1924 = vpack.c.b16 %v1344, %v1342
    %v1925 = vpack.c.b16 %v1347, %v1345
    %v1926 = vpack.c.b16 %v1348, %v1346
    %v1927 = vpack.c.b16 %v1351, %v1349
    %v1928 = vpack.c.b16 %v1352, %v1350
    %v1929 = vpack.c.b16 %v1355, %v1353
    %v1930 = vpack.c.b16 %v1356, %v1354
    %v1931 = vpack.c.b16 %v1359, %v1357
    %v1932 = vpack.c.b16 %v1360, %v1358
    %v1933 = vpack.c.b16 %v1363, %v1361
    %v1934 = vpack.c.b16 %v1364, %v1362
    %v1935 = vpack.c.b16 %v1367, %v1365
    %v1936 = vpack.c.b16 %v1368, %v1366
    %v1937 = vpack.c.b16 %v1371, %v1369
    %v1938 = vpack.c.b16 %v1372, %v1370
    %v1939 = vpack.c.b16 %v1375, %v1373
    %v1940 = vpack.c.b16 %v1376, %v1374
    %v1941 = vpack.c.b16 %v1379, %v1377
    %v1942 = vpack.c.b16 %v1380, %v1378
    %v1943 = vpack.c.b16 %v1383, %v1381
    %v1944 = vpack.c.b16 %v1384, %v1382
    %v1945 = vpack.c.b16 %v1387, %v1385
    %v1946 = vpack.c.b16 %v1388, %v1386
    %v1947 = vpack.c.b16 %v1391, %v1389
    %v1948 = vpack.c.b16 %v1392, %v1390
    %v1949 = vpack.c.b16 %v1395, %v1393
    %v1950 = vpack.c.b16 %v1396, %v1394
    %v1951 = vpack.c.b16 %v1399, %v1397
    %v1952 = vpack.c.b16 %v1400, %v1398
    %v1953 = vpack.c.b16 %v1403, %v1401
    %v1954 = vpack.c.b16 %v1404, %v1402
    %v1955 = vpack.c.b16 %v1407, %v1405
    %v1956 = vpack.c.b16 %v1408, %v1406
    %v1957 = vpack.c.b16 %v1411, %v1409
    %v1958 = vpack.c.b16 %v1412, %v1410
    %v1959 = vpack.c.b16 %v1415, %v1413
    %v1960 = vpack.c.b16 %v1416, %v1414
    %v1961 = vpack.c.b16 %v1419, %v1417
    %v1962 = vpack.c.b16 %v1420, %v1418
    %v1963 = vpack.c.b16 %v1423, %v1421
    %v1964 = vpack.c.b16 %v1424, %v1422
    %v1965 = vpack.c.b16 %v1427, %v1425
    %v1966 = vpack.c.b16 %v1428, %v1426
    %v1967 = vpack.c.b16 %v1431, %v1429
    %v1968 = vpack.c.b16 %v1432, %v1430
    %v1969 = vpack.c.b16 %v1435, %v1433
    %v1970 = vpack.c.b16 %v1436, %v1434
    %v1971 = vpack.c.b16 %v1439, %v1437
    %v1972 = vpack.c.b16 %v1440, %v1438
    %v1973 = vpack.c.b16 %v1443, %v1441
    %v1974 = vpack.c.b16 %v1444, %v1442
    %v1975 = vpack.c.b16 %v1447, %v1445
    %v1976 = vpack.c.b16 %v1448, %v1446
    %v1977 = vpack.c.b16 %v1451, %v1449
    %v1978 = vpack.c.b16 %v1452, %v1450
    %v1979 = vpack.c.b16 %v1455, %v1453
    %v1980 = vpack.c.b16 %v1456, %v1454
    %v1981 = vpack.c.b16 %v1459, %v1457
    %v1982 = vpack.c.b16 %v1460, %v1458
    %v1983 = vpack.c.b16 %v1463, %v1461
    %v1984 = vpack.c.b16 %v1464, %v1462
    %v1985 = vpack.c.b16 %v1467, %v1465
    %v1986 = vpack.c.b16 %v1468, %v1466
    %v1987 = vpack.c.b16 %v1471, %v1469
    %v1988 = vpack.c.b16 %v1472, %v1470
    %v1989 = vpack.c.b16 %v1475, %v1473
    %v1990 = vpack.c.b16 %v1476, %v1474
    %v1991 = vpack.c.b16 %v1479, %v1477
    %v1992 = vpack.c.b16 %v1480, %v1478
    %v1993 = vpack.c.b16 %v1483, %v1481
    %v1994 = vpack.c.b16 %v1484, %v1482
    %v1995 = vpack.c.b16 %v1487, %v1485
    %v1996 = vpack.c.b16 %v1488, %v1486
    %v1997 = vpack.c.b16 %v1491, %v1489
    %v1998 = vpack.c.b16 %v1492, %v1490
    %v1999 = vpack.c.b16 %v1495, %v1493
    %v2000 = vpack.c.b16 %v1496, %v1494
    %v2001 = vpack.c.b16 %v1499, %v1497
    %v2002 = vpack.c.b16 %v1500, %v1498
    %v2003 = vpack.c.b16 %v1503, %v1501
    %v2004 = vpack.c.b16 %v1504, %v1502
    %v2005 = vpack.c.b16 %v1507, %v1505
    %v2006 = vpack.c.b16 %v1508, %v1506
    %v2007 = vpack.c.b16 %v1511, %v1509
    %v2008 = vpack.c.b16 %v1512, %v1510
    %v2009 = vpack.c.b16 %v1515, %v1513
    %v2010 = vpack.c.b16 %v1516, %v1514
    %v2011 = vpack.c.b16 %v1519, %v1517
    %v2012 = vpack.c.b16 %v1520, %v1518
    %v2013 = vpack.c.b16 %v1523, %v1521
    %v2014 = vpack.c.b16 %v1524, %v1522
    %v2015 = vpack.c.b16 %v1527, %v1525
    %v2016 = vpack.c.b16 %v1528, %v1526
    %v2017 = vpack.c.b16 %v1531, %v1529
    %v2018 = vpack.c.b16 %v1532, %v1530
    %v2019 = vpack.c.b16 %v1535, %v1533
    %v2020 = vpack.c.b16 %v1536, %v1534
    %v2021 = vpack.c.b16 %v1539, %v1537
    %v2022 = vpack.c.b16 %v1540, %v1538
    %v2023 = vpack.c.b16 %v1543, %v1541
    %v2024 = vpack.c.b16 %v1544, %v1542
    %v2025 = vpack.c.b16 %v1547, %v1545
    %v2026 = vpack.c.b16 %v1548, %v1546
    %v2027 = vpack.c.b16 %v1551, %v1549
    %v2028 = vpack.c.b16 %v1552, %v1550
    %v2029 = vpack.c.b16 %v1555, %v1553
    %v2030 = vpack.c.b16 %v1556, %v1554
    %v2031 = vpack.c.b16 %v1559, %v1557
    %v2032 = vpack.c.b16 %v1560, %v1558
    %v2033 = vpack.c.b16 %v1563, %v1561
    %v2034 = vpack.c.b16 %v1564, %v1562
    %v2035 = vpack.c.b16 %v1567, %v1565
    %v2036 = vpack.c.b16 %v1568, %v1566
    %v2037 = vpack.c.b16 %v1571, %v1569
    %v2038 = vpack.c.b16 %v1572, %v1570
    %v2039 = vpack.c.b16 %v1575, %v1573
    %v2040 = vpack.c.b16 %v1576, %v1574
    %v2041 = vpack.c.b16 %v1579, %v1577
    %v2042 = vpack.c.b16 %v1580, %v1578
    %v2043 = vpack.c.b16 %v1583, %v1581
    %v2044 = vpack.c.b16 %v1584, %v1582
    %v2045 = vpack.c.b16 %v1587, %v1585
    %v2046 = vpack.c.b16 %v1588, %v1586
    %v2047 = vpack.c.b16 %v1591, %v1589
    %v2048 = vpack.c.b16 %v1592, %v1590
    %v2049 = vpack.c.b16 %v1595, %v1593
    %v2050 = vpack.c.b16 %v1596, %v1594
    %v2051 = vpack.c.b16 %v1599, %v1597
    %v2052 = vpack.c.b16 %v1600, %v1598
    %v2053 = vpack.c.b16 %v1603, %v1601
    %v2054 = vpack.c.b16 %v1604, %v1602
    %v2055 = vpack.c.b16 %v1607, %v1605
    %v2056 = vpack.c.b16 %v1608, %v1606
    %v2057 = vpack.c.b16 %v1611, %v1609
    %v2058 = vpack.c.b16 %v1612, %v1610
    %v2059 = vpack.c.b16 %v1615, %v1613
    %v2060 = vpack.c.b16 %v1616, %v1614
    %v2061 = vpack.c.b16 %v1619, %v1617
    %v2062 = vpack.c.b16 %v1620, %v1618
    %v2063 = vpack.c.b16 %v1623, %v1621
    %v2064 = vpack.c.b16 %v1624, %v1622
    %v2065 = vpack.c.b16 %v1627, %v1625
    %v2066 = vpack.c.b16 %v1628, %v1626
    %v2067 = vpack.c.b16 %v1631, %v1629
    %v2068 = vpack.c.b16 %v1632, %v1630
    %v2069 = vpack.c.b16 %v1635, %v1633
    %v2070 = vpack.c.b16 %v1636, %v1634
    %v2071 = vpack.c.b16 %v1639, %v1637
    %v2072 = vpack.c.b16 %v1640, %v1638
    %v2073 = vpack.c.b16 %v1643, %v1641
    %v2074 = vpack.c.b16 %v1644, %v1642
    %v2075 = vpack.c.b16 %v1647, %v1645
    %v2076 = vpack.c.b16 %v1648, %v1646
    %v2077 = vpack.c.b16 %v1651, %v1649
    %v2078 = vpack.c.b16 %v1652, %v1650
    %v2079 = vpack.c.b16 %v1655, %v1653
    %v2080 = vpack.c.b16 %v1656, %v1654
    %v2081 = vpack.c.b16 %v1659, %v1657
    %v2082 = vpack.c.b16 %v1660, %v1658
    %v2083 = vpack.c.b16 %v1663, %v1661
    %v2084 = vpack.c.b16 %v1664, %v1662
    %v2085 = vpack.c.b16 %v1667, %v1665
    %v2086 = vpack.c.b16 %v1668, %v1666
    %v2087 = vpack.c.b16 %v1671, %v1669
    %v2088 = vpack.c.b16 %v1672, %v1670
    %v2089 = vpack.c.b16 %v1675, %v1673
    %v2090 = vpack.c.b16 %v1676, %v1674
    %v2091 = vpack.c.b16 %v1679, %v1677
    %v2092 = vpack.c.b16 %v1680, %v1678
    %v2093 = vpack.c.b16 %v1683, %v1681
    %v2094 = vpack.c.b16 %v1684, %v1682
    %v2095 = vpack.c.b16 %v1687, %v1685
    %v2096 = vpack.c.b16 %v1688, %v1686
    %v2097 = vpack.c.b16 %v1691, %v1689
    %v2098 = vpack.c.b16 %v1692, %v1690
    %v2099 = vpack.c.b16 %v1695, %v1693
    %v2100 = vpack.c.b16 %v1696, %v1694
    %v2101 = vpack.c.b16 %v1699, %v1697
    %v2102 = vpack.c.b16 %v1700, %v1698
    %v2103 = vpack.c.b16 %v1703, %v1701
    %v2104 = vpack.c.b16 %v1704, %v1702
    %v2105 = vpack.c.b16 %v1707, %v1705
    %v2106 = vpack.c.b16 %v1708, %v1706
    %v2107 = vpack.c.b16 %v1711, %v1709
    %v2108 = vpack.c.b16 %v1712, %v1710
    %v2109 = vpack.c.b16 %v1715, %v1713
    %v2110 = vpack.c.b16 %v1716, %v1714
    %v2111 = vpack.c.b16 %v1719, %v1717
    %v2112 = vpack.c.b16 %v1720, %v1718
    %v2113 = vpack.c.b16 %v1723, %v1721
    %v2114 = vpack.c.b16 %v1724, %v1722
    %v2115 = vpack.c.b16 %v1727, %v1725
    %v2116 = vpack.c.b16 %v1728, %v1726
    %v2117 = vpack.c.b16 %v1731, %v1729
    %v2118 = vpack.c.b16 %v1732, %v1730
    %v2119 = vpack.c.b16 %v1735, %v1733
    %v2120 = vpack.c.b16 %v1736, %v1734
    %2505 = vmatprep.subr.bf16.mxu0 %v1738
    %2506 = vmatpush1.bf16.msra.mxu0 %v1737
    %2507 = vmatprep.subr.bf16.mxu0 %v1740
    %2508 = vmatpush1.bf16.msra.mxu0 %v1739
    %2509 = vmatprep.subr.bf16.mxu0 %v1742
    %2510 = vmatpush1.bf16.msra.mxu0 %v1741
    %2511 = vmatprep.subr.bf16.mxu0 %v1744
    %2512 = vmatpush1.bf16.msra.mxu0 %v1743
    %2513 = vmatprep.subr.bf16.mxu0 %v1746
    %2514 = vmatpush1.bf16.msra.mxu0 %v1745
    %2515 = vmatprep.subr.bf16.mxu0 %v1748
    %2516 = vmatpush1.bf16.msra.mxu0 %v1747
    %2517 = vmatprep.subr.bf16.mxu0 %v1750
    %2518 = vmatpush1.bf16.msra.mxu0 %v1749
    %2519 = vmatprep.subr.bf16.mxu0 %v1752
    %2520 = vmatpush1.bf16.msra.mxu0 %v1751
    %2521 = vmatprep.subr.bf16.mxu0 %v1754
    %2522 = vmatpush1.bf16.msra.mxu0 %v1753
    %2523 = vmatprep.subr.bf16.mxu0 %v1756
    %2524 = vmatpush1.bf16.msra.mxu0 %v1755
    %2525 = vmatprep.subr.bf16.mxu0 %v1758
    %2526 = vmatpush1.bf16.msra.mxu0 %v1757
    %2527 = vmatprep.subr.bf16.mxu0 %v1760
    %2528 = vmatpush1.bf16.msra.mxu0 %v1759
    %2529 = vmatprep.subr.bf16.mxu0 %v1762
    %2530 = vmatpush1.bf16.msra.mxu0 %v1761
    %2531 = vmatprep.subr.bf16.mxu0 %v1764
    %2532 = vmatpush1.bf16.msra.mxu0 %v1763
    %2533 = vmatprep.subr.bf16.mxu0 %v1766
    %2534 = vmatpush1.bf16.msra.mxu0 %v1765
    %2535 = vmatprep.subr.bf16.mxu0 %v1768
    %2536 = vmatpush1.bf16.msra.mxu0 %v1767
    %2537 = vmatprep.mubr.bf16.mxu0 %v166
    %2538 = vmatmul.mubr.bf16.gmra.mrb[0].mxu0 %v165
    %v2539 = vpop.f32.mrb[0].mxu0
    %v2540 = vadd.f32 %v578, %v2539
    %v2541 = vpop.f32.mrb[0].mxu0
    %v2542 = vadd.f32 %v582, %v2541
    %v2543 = vpop.f32.mrb[0].mxu0
    %v2544 = vadd.f32 %v578, %v2543
    %v2545 = vpop.f32.mrb[0].mxu0
    %v2546 = vadd.f32 %v582, %v2545
    %2547 = vdwg.mxu0
    %2548 = vmatprep.subr.bf16.mxu0 %v1770
    %2549 = vmatpush1.bf16.msra.mxu0 %v1769
    %2550 = vmatprep.subr.bf16.mxu0 %v1772
    %2551 = vmatpush1.bf16.msra.mxu0 %v1771
    %2552 = vmatprep.subr.bf16.mxu0 %v1774
    %2553 = vmatpush1.bf16.msra.mxu0 %v1773
    %2554 = vmatprep.subr.bf16.mxu0 %v1776
    %2555 = vmatpush1.bf16.msra.mxu0 %v1775
    %2556 = vmatprep.subr.bf16.mxu0 %v1778
    %2557 = vmatpush1.bf16.msra.mxu0 %v1777
    %2558 = vmatprep.subr.bf16.mxu0 %v1780
    %2559 = vmatpush1.bf16.msra.mxu0 %v1779
    %2560 = vmatprep.subr.bf16.mxu0 %v1782
    %2561 = vmatpush1.bf16.msra.mxu0 %v1781
    %2562 = vmatprep.subr.bf16.mxu0 %v1784
    %2563 = vmatpush1.bf16.msra.mxu0 %v1783
    %2564 = vmatprep.subr.bf16.mxu0 %v1786
    %2565 = vmatpush1.bf16.msra.mxu0 %v1785
    %2566 = vmatprep.subr.bf16.mxu0 %v1788
    %2567 = vmatpush1.bf16.msra.mxu0 %v1787
    %2568 = vmatprep.subr.bf16.mxu0 %v1790
    %2569 = vmatpush1.bf16.msra.mxu0 %v1789
    %2570 = vmatprep.subr.bf16.mxu0 %v1792
    %2571 = vmatpush1.bf16.msra.mxu0 %v1791
    %2572 = vmatprep.subr.bf16.mxu0 %v1794
    %2573 = vmatpush1.bf16.msra.mxu0 %v1793
    %2574 = vmatprep.subr.bf16.mxu0 %v1796
    %2575 = vmatpush1.bf16.msra.mxu0 %v1795
    %2576 = vmatprep.subr.bf16.mxu0 %v1798
    %2577 = vmatpush1.bf16.msra.mxu0 %v1797
    %2578 = vmatprep.subr.bf16.mxu0 %v1800
    %2579 = vmatpush1.bf16.msra.mxu0 %v1799
    %2580 = vmatprep.mubr.bf16.mxu0 %v168
    %2581 = vmatmul.mubr.bf16.gmra.mrb[0].mxu0 %v167
    %v2582 = vpop.f32.mrb[0].mxu0
    %v2583 = vadd.f32 %v2540, %v2582
    %v2584 = vpop.f32.mrb[0].mxu0
    %v2585 = vadd.f32 %v2542, %v2584
    %v2586 = vpop.f32.mrb[0].mxu0
    %v2587 = vadd.f32 %v2544, %v2586
    %v2588 = vpop.f32.mrb[0].mxu0
    %v2589 = vadd.f32 %v2546, %v2588
    %2590 = vdwg.mxu0
    %2591 = vmatprep.subr.bf16.mxu0 %v1802
    %2592 = vmatpush1.bf16.msra.mxu0 %v1801
    %2593 = vmatprep.subr.bf16.mxu0 %v1804
    %2594 = vmatpush1.bf16.msra.mxu0 %v1803
    %2595 = vmatprep.subr.bf16.mxu0 %v1806
    %2596 = vmatpush1.bf16.msra.mxu0 %v1805
    %2597 = vmatprep.subr.bf16.mxu0 %v1808
    %2598 = vmatpush1.bf16.msra.mxu0 %v1807
    %2599 = vmatprep.subr.bf16.mxu0 %v1810
    %2600 = vmatpush1.bf16.msra.mxu0 %v1809
    %2601 = vmatprep.subr.bf16.mxu0 %v1812
    %2602 = vmatpush1.bf16.msra.mxu0 %v1811
    %2603 = vmatprep.subr.bf16.mxu0 %v1814
    %2604 = vmatpush1.bf16.msra.mxu0 %v1813
    %2605 = vmatprep.subr.bf16.mxu0 %v1816
    %2606 = vmatpush1.bf16.msra.mxu0 %v1815
    %2607 = vmatprep.subr.bf16.mxu0 %v1818
    %2608 = vmatpush1.bf16.msra.mxu0 %v1817
    %2609 = vmatprep.subr.bf16.mxu0 %v1820
    %2610 = vmatpush1.bf16.msra.mxu0 %v1819
    %2611 = vmatprep.subr.bf16.mxu0 %v1822
    %2612 = vmatpush1.bf16.msra.mxu0 %v1821
    %2613 = vmatprep.subr.bf16.mxu0 %v1824
    %2614 = vmatpush1.bf16.msra.mxu0 %v1823
    %2615 = vmatprep.subr.bf16.mxu0 %v1826
    %2616 = vmatpush1.bf16.msra.mxu0 %v1825
    %2617 = vmatprep.subr.bf16.mxu0 %v1828
    %2618 = vmatpush1.bf16.msra.mxu0 %v1827
    %2619 = vmatprep.subr.bf16.mxu0 %v1830
    %2620 = vmatpush1.bf16.msra.mxu0 %v1829
    %2621 = vmatprep.subr.bf16.mxu0 %v1832
    %2622 = vmatpush1.bf16.msra.mxu0 %v1831
    %2623 = vmatprep.mubr.bf16.mxu0 %v170
    %2624 = vmatmul.mubr.bf16.gmra.mrb[0].mxu0 %v169
    %v2625 = vpop.f32.mrb[0].mxu0
    %v2626 = vadd.f32 %v2583, %v2625
    %v2627 = vpop.f32.mrb[0].mxu0
    %v2628 = vadd.f32 %v2585, %v2627
    %v2629 = vpop.f32.mrb[0].mxu0
    %v2630 = vadd.f32 %v2587, %v2629
    %v2631 = vpop.f32.mrb[0].mxu0
    %v2632 = vadd.f32 %v2589, %v2631
    %2633 = vdwg.mxu0
    %2634 = vmatprep.subr.bf16.mxu0 %v1834
    %2635 = vmatpush1.bf16.msra.mxu0 %v1833
    %2636 = vmatprep.subr.bf16.mxu0 %v1836
    %2637 = vmatpush1.bf16.msra.mxu0 %v1835
    %2638 = vmatprep.subr.bf16.mxu0 %v1838
    %2639 = vmatpush1.bf16.msra.mxu0 %v1837
    %2640 = vmatprep.subr.bf16.mxu0 %v1840
    %2641 = vmatpush1.bf16.msra.mxu0 %v1839
    %2642 = vmatprep.subr.bf16.mxu0 %v1842
    %2643 = vmatpush1.bf16.msra.mxu0 %v1841
    %2644 = vmatprep.subr.bf16.mxu0 %v1844
    %2645 = vmatpush1.bf16.msra.mxu0 %v1843
    %2646 = vmatprep.subr.bf16.mxu0 %v1846
    %2647 = vmatpush1.bf16.msra.mxu0 %v1845
    %2648 = vmatprep.subr.bf16.mxu0 %v1848
    %2649 = vmatpush1.bf16.msra.mxu0 %v1847
    %2650 = vmatprep.subr.bf16.mxu0 %v1850
    %2651 = vmatpush1.bf16.msra.mxu0 %v1849
    %2652 = vmatprep.subr.bf16.mxu0 %v1852
    %2653 = vmatpush1.bf16.msra.mxu0 %v1851
    %2654 = vmatprep.subr.bf16.mxu0 %v1854
    %2655 = vmatpush1.bf16.msra.mxu0 %v1853
    %2656 = vmatprep.subr.bf16.mxu0 %v1856
    %2657 = vmatpush1.bf16.msra.mxu0 %v1855
    %2658 = vmatprep.subr.bf16.mxu0 %v1858
    %2659 = vmatpush1.bf16.msra.mxu0 %v1857
    %2660 = vmatprep.subr.bf16.mxu0 %v1860
    %2661 = vmatpush1.bf16.msra.mxu0 %v1859
    %2662 = vmatprep.subr.bf16.mxu0 %v1862
    %2663 = vmatpush1.bf16.msra.mxu0 %v1861
    %2664 = vmatprep.subr.bf16.mxu0 %v1864
    %2665 = vmatpush1.bf16.msra.mxu0 %v1863
    %2666 = vmatprep.mubr.bf16.mxu0 %v172
    %2667 = vmatmul.mubr.bf16.gmra.mrb[0].mxu0 %v171
    %v2668 = vpop.f32.mrb[0].mxu0
    %v2669 = vadd.f32 %v2626, %v2668
    %v2670 = vpop.f32.mrb[0].mxu0
    %v2671 = vadd.f32 %v2628, %v2670
    %v2672 = vpop.f32.mrb[0].mxu0
    %v2673 = vadd.f32 %v2630, %v2672
    %v2674 = vpop.f32.mrb[0].mxu0
    %v2675 = vadd.f32 %v2632, %v2674
    %2676 = vdwg.mxu0
    %2677 = vmatprep.subr.bf16.mxu0 %v1866
    %2678 = vmatpush1.bf16.msra.mxu0 %v1865
    %2679 = vmatprep.subr.bf16.mxu0 %v1868
    %2680 = vmatpush1.bf16.msra.mxu0 %v1867
    %2681 = vmatprep.subr.bf16.mxu0 %v1870
    %2682 = vmatpush1.bf16.msra.mxu0 %v1869
    %2683 = vmatprep.subr.bf16.mxu0 %v1872
    %2684 = vmatpush1.bf16.msra.mxu0 %v1871
    %2685 = vmatprep.subr.bf16.mxu0 %v1874
    %2686 = vmatpush1.bf16.msra.mxu0 %v1873
    %2687 = vmatprep.subr.bf16.mxu0 %v1876
    %2688 = vmatpush1.bf16.msra.mxu0 %v1875
    %2689 = vmatprep.subr.bf16.mxu0 %v1878
    %2690 = vmatpush1.bf16.msra.mxu0 %v1877
    %2691 = vmatprep.subr.bf16.mxu0 %v1880
    %2692 = vmatpush1.bf16.msra.mxu0 %v1879
    %2693 = vmatprep.subr.bf16.mxu0 %v1882
    %2694 = vmatpush1.bf16.msra.mxu0 %v1881
    %2695 = vmatprep.subr.bf16.mxu0 %v1884
    %2696 = vmatpush1.bf16.msra.mxu0 %v1883
    %2697 = vmatprep.subr.bf16.mxu0 %v1886
    %2698 = vmatpush1.bf16.msra.mxu0 %v1885
    %2699 = vmatprep.subr.bf16.mxu0 %v1888
    %2700 = vmatpush1.bf16.msra.mxu0 %v1887
    %2701 = vmatprep.subr.bf16.mxu0 %v1890
    %2702 = vmatpush1.bf16.msra.mxu0 %v1889
    %2703 = vmatprep.subr.bf16.mxu0 %v1892
    %2704 = vmatpush1.bf16.msra.mxu0 %v1891
    %2705 = vmatprep.subr.bf16.mxu0 %v1894
    %2706 = vmatpush1.bf16.msra.mxu0 %v1893
    %2707 = vmatprep.subr.bf16.mxu0 %v1896
    %2708 = vmatpush1.bf16.msra.mxu0 %v1895
    %2709 = vmatprep.mubr.bf16.mxu0 %v174
    %2710 = vmatmul.mubr.bf16.gmra.mrb[0].mxu0 %v173
    %v2711 = vpop.f32.mrb[0].mxu0
    %v2712 = vadd.f32 %v2669, %v2711
    %v2713 = vpop.f32.mrb[0].mxu0
    %v2714 = vadd.f32 %v2671, %v2713
    %v2715 = vpop.f32.mrb[0].mxu0
    %v2716 = vadd.f32 %v2673, %v2715
    %v2717 = vpop.f32.mrb[0].mxu0
    %v2718 = vadd.f32 %v2675, %v2717
    %2719 = vdwg.mxu0
    %2720 = vmatprep.subr.bf16.mxu0 %v1898
    %2721 = vmatpush1.bf16.msra.mxu0 %v1897
    %2722 = vmatprep.subr.bf16.mxu0 %v1900
    %2723 = vmatpush1.bf16.msra.mxu0 %v1899
    %2724 = vmatprep.subr.bf16.mxu0 %v1902
    %2725 = vmatpush1.bf16.msra.mxu0 %v1901
    %2726 = vmatprep.subr.bf16.mxu0 %v1904
    %2727 = vmatpush1.bf16.msra.mxu0 %v1903
    %2728 = vmatprep.subr.bf16.mxu0 %v1906
    %2729 = vmatpush1.bf16.msra.mxu0 %v1905
    %2730 = vmatprep.subr.bf16.mxu0 %v1908
    %2731 = vmatpush1.bf16.msra.mxu0 %v1907
    %2732 = vmatprep.subr.bf16.mxu0 %v1910
    %2733 = vmatpush1.bf16.msra.mxu0 %v1909
    %2734 = vmatprep.subr.bf16.mxu0 %v1912
    %2735 = vmatpush1.bf16.msra.mxu0 %v1911
    %2736 = vmatprep.subr.bf16.mxu0 %v1914
    %2737 = vmatpush1.bf16.msra.mxu0 %v1913
    %2738 = vmatprep.subr.bf16.mxu0 %v1916
    %2739 = vmatpush1.bf16.msra.mxu0 %v1915
    %2740 = vmatprep.subr.bf16.mxu0 %v1918
    %2741 = vmatpush1.bf16.msra.mxu0 %v1917
    %2742 = vmatprep.subr.bf16.mxu0 %v1920
    %2743 = vmatpush1.bf16.msra.mxu0 %v1919
    %2744 = vmatprep.subr.bf16.mxu0 %v1922
    %2745 = vmatpush1.bf16.msra.mxu0 %v1921
    %2746 = vmatprep.subr.bf16.mxu0 %v1924
    %2747 = vmatpush1.bf16.msra.mxu0 %v1923
    %2748 = vmatprep.subr.bf16.mxu0 %v1926
    %2749 = vmatpush1.bf16.msra.mxu0 %v1925
    %2750 = vmatprep.subr.bf16.mxu0 %v1928
    %2751 = vmatpush1.bf16.msra.mxu0 %v1927
    %2752 = vmatprep.mubr.bf16.mxu0 %v176
    %2753 = vmatmul.mubr.bf16.gmra.mrb[0].mxu0 %v175
    %v2754 = vpop.f32.mrb[0].mxu0
    %v2755 = vadd.f32 %v2712, %v2754
    %v2756 = vpop.f32.mrb[0].mxu0
    %v2757 = vadd.f32 %v2714, %v2756
    %v2758 = vpop.f32.mrb[0].mxu0
    %v2759 = vadd.f32 %v2716, %v2758
    %v2760 = vpop.f32.mrb[0].mxu0
    %v2761 = vadd.f32 %v2718, %v2760
    %2762 = vdwg.mxu0
    %2763 = vmatprep.subr.bf16.mxu0 %v1930
    %2764 = vmatpush1.bf16.msra.mxu0 %v1929
    %2765 = vmatprep.subr.bf16.mxu0 %v1932
    %2766 = vmatpush1.bf16.msra.mxu0 %v1931
    %2767 = vmatprep.subr.bf16.mxu0 %v1934
    %2768 = vmatpush1.bf16.msra.mxu0 %v1933
    %2769 = vmatprep.subr.bf16.mxu0 %v1936
    %2770 = vmatpush1.bf16.msra.mxu0 %v1935
    %2771 = vmatprep.subr.bf16.mxu0 %v1938
    %2772 = vmatpush1.bf16.msra.mxu0 %v1937
    %2773 = vmatprep.subr.bf16.mxu0 %v1940
    %2774 = vmatpush1.bf16.msra.mxu0 %v1939
    %2775 = vmatprep.subr.bf16.mxu0 %v1942
    %2776 = vmatpush1.bf16.msra.mxu0 %v1941
    %2777 = vmatprep.subr.bf16.mxu0 %v1944
    %2778 = vmatpush1.bf16.msra.mxu0 %v1943
    %2779 = vmatprep.subr.bf16.mxu0 %v1946
    %2780 = vmatpush1.bf16.msra.mxu0 %v1945
    %2781 = vmatprep.subr.bf16.mxu0 %v1948
    %2782 = vmatpush1.bf16.msra.mxu0 %v1947
    %2783 = vmatprep.subr.bf16.mxu0 %v1950
    %2784 = vmatpush1.bf16.msra.mxu0 %v1949
    %2785 = vmatprep.subr.bf16.mxu0 %v1952
    %2786 = vmatpush1.bf16.msra.mxu0 %v1951
    %2787 = vmatprep.subr.bf16.mxu0 %v1954
    %2788 = vmatpush1.bf16.msra.mxu0 %v1953
    %2789 = vmatprep.subr.bf16.mxu0 %v1956
    %2790 = vmatpush1.bf16.msra.mxu0 %v1955
    %2791 = vmatprep.subr.bf16.mxu0 %v1958
    %2792 = vmatpush1.bf16.msra.mxu0 %v1957
    %2793 = vmatprep.subr.bf16.mxu0 %v1960
    %2794 = vmatpush1.bf16.msra.mxu0 %v1959
    %2795 = vmatprep.mubr.bf16.mxu0 %v178
    %2796 = vmatmul.mubr.bf16.gmra.mrb[0].mxu0 %v177
    %v2797 = vpop.f32.mrb[0].mxu0
    %v2798 = vadd.f32 %v2755, %v2797
    %v2799 = vpop.f32.mrb[0].mxu0
    %v2800 = vadd.f32 %v2757, %v2799
    %v2801 = vpop.f32.mrb[0].mxu0
    %v2802 = vadd.f32 %v2759, %v2801
    %v2803 = vpop.f32.mrb[0].mxu0
    %v2804 = vadd.f32 %v2761, %v2803
    %2805 = vdwg.mxu0
    %2806 = vmatprep.subr.bf16.mxu0 %v1962
    %2807 = vmatpush1.bf16.msra.mxu0 %v1961
    %2808 = vmatprep.subr.bf16.mxu0 %v1964
    %2809 = vmatpush1.bf16.msra.mxu0 %v1963
    %2810 = vmatprep.subr.bf16.mxu0 %v1966
    %2811 = vmatpush1.bf16.msra.mxu0 %v1965
    %2812 = vmatprep.subr.bf16.mxu0 %v1968
    %2813 = vmatpush1.bf16.msra.mxu0 %v1967
    %2814 = vmatprep.subr.bf16.mxu0 %v1970
    %2815 = vmatpush1.bf16.msra.mxu0 %v1969
    %2816 = vmatprep.subr.bf16.mxu0 %v1972
    %2817 = vmatpush1.bf16.msra.mxu0 %v1971
    %2818 = vmatprep.subr.bf16.mxu0 %v1974
    %2819 = vmatpush1.bf16.msra.mxu0 %v1973
    %2820 = vmatprep.subr.bf16.mxu0 %v1976
    %2821 = vmatpush1.bf16.msra.mxu0 %v1975
    %2822 = vmatprep.subr.bf16.mxu0 %v1978
    %2823 = vmatpush1.bf16.msra.mxu0 %v1977
    %2824 = vmatprep.subr.bf16.mxu0 %v1980
    %2825 = vmatpush1.bf16.msra.mxu0 %v1979
    %2826 = vmatprep.subr.bf16.mxu0 %v1982
    %2827 = vmatpush1.bf16.msra.mxu0 %v1981
    %2828 = vmatprep.subr.bf16.mxu0 %v1984
    %2829 = vmatpush1.bf16.msra.mxu0 %v1983
    %2830 = vmatprep.subr.bf16.mxu0 %v1986
    %2831 = vmatpush1.bf16.msra.mxu0 %v1985
    %2832 = vmatprep.subr.bf16.mxu0 %v1988
    %2833 = vmatpush1.bf16.msra.mxu0 %v1987
    %2834 = vmatprep.subr.bf16.mxu0 %v1990
    %2835 = vmatpush1.bf16.msra.mxu0 %v1989
    %2836 = vmatprep.subr.bf16.mxu0 %v1992
    %2837 = vmatpush1.bf16.msra.mxu0 %v1991
    %2838 = vmatprep.mubr.bf16.mxu0 %v180
    %2839 = vmatmul.mubr.bf16.gmra.mrb[0].mxu0 %v179
    %v2840 = vpop.f32.mrb[0].mxu0
    %v2841 = vadd.f32 %v2798, %v2840
    %v2842 = vpop.f32.mrb[0].mxu0
    %v2843 = vadd.f32 %v2800, %v2842
    %v2844 = vpop.f32.mrb[0].mxu0
    %v2845 = vadd.f32 %v2802, %v2844
    %v2846 = vpop.f32.mrb[0].mxu0
    %v2847 = vadd.f32 %v2804, %v2846
    %2848 = vdwg.mxu0
    %2849 = vmatprep.subr.bf16.mxu0 %v1994
    %2850 = vmatpush1.bf16.msra.mxu0 %v1993
    %2851 = vmatprep.subr.bf16.mxu0 %v1996
    %2852 = vmatpush1.bf16.msra.mxu0 %v1995
    %2853 = vmatprep.subr.bf16.mxu0 %v1998
    %2854 = vmatpush1.bf16.msra.mxu0 %v1997
    %2855 = vmatprep.subr.bf16.mxu0 %v2000
    %2856 = vmatpush1.bf16.msra.mxu0 %v1999
    %2857 = vmatprep.subr.bf16.mxu0 %v2002
    %2858 = vmatpush1.bf16.msra.mxu0 %v2001
    %2859 = vmatprep.subr.bf16.mxu0 %v2004
    %2860 = vmatpush1.bf16.msra.mxu0 %v2003
    %2861 = vmatprep.subr.bf16.mxu0 %v2006
    %2862 = vmatpush1.bf16.msra.mxu0 %v2005
    %2863 = vmatprep.subr.bf16.mxu0 %v2008
    %2864 = vmatpush1.bf16.msra.mxu0 %v2007
    %2865 = vmatprep.subr.bf16.mxu0 %v2010
    %2866 = vmatpush1.bf16.msra.mxu0 %v2009
    %2867 = vmatprep.subr.bf16.mxu0 %v2012
    %2868 = vmatpush1.bf16.msra.mxu0 %v2011
    %2869 = vmatprep.subr.bf16.mxu0 %v2014
    %2870 = vmatpush1.bf16.msra.mxu0 %v2013
    %2871 = vmatprep.subr.bf16.mxu0 %v2016
    %2872 = vmatpush1.bf16.msra.mxu0 %v2015
    %2873 = vmatprep.subr.bf16.mxu0 %v2018
    %2874 = vmatpush1.bf16.msra.mxu0 %v2017
    %2875 = vmatprep.subr.bf16.mxu0 %v2020
    %2876 = vmatpush1.bf16.msra.mxu0 %v2019
    %2877 = vmatprep.subr.bf16.mxu0 %v2022
    %2878 = vmatpush1.bf16.msra.mxu0 %v2021
    %2879 = vmatprep.subr.bf16.mxu0 %v2024
    %2880 = vmatpush1.bf16.msra.mxu0 %v2023
    %2881 = vmatprep.mubr.bf16.mxu0 %v182
    %2882 = vmatmul.mubr.bf16.gmra.mrb[0].mxu0 %v181
    %v2883 = vpop.f32.mrb[0].mxu0
    %v2884 = vadd.f32 %v2841, %v2883
    %v2885 = vpop.f32.mrb[0].mxu0
    %v2886 = vadd.f32 %v2843, %v2885
    %v2887 = vpop.f32.mrb[0].mxu0
    %v2888 = vadd.f32 %v2845, %v2887
    %v2889 = vpop.f32.mrb[0].mxu0
    %v2890 = vadd.f32 %v2847, %v2889
    %2891 = vdwg.mxu0
    %2892 = vmatprep.subr.bf16.mxu0 %v2026
    %2893 = vmatpush1.bf16.msra.mxu0 %v2025
    %2894 = vmatprep.subr.bf16.mxu0 %v2028
    %2895 = vmatpush1.bf16.msra.mxu0 %v2027
    %2896 = vmatprep.subr.bf16.mxu0 %v2030
    %2897 = vmatpush1.bf16.msra.mxu0 %v2029
    %2898 = vmatprep.subr.bf16.mxu0 %v2032
    %2899 = vmatpush1.bf16.msra.mxu0 %v2031
    %2900 = vmatprep.subr.bf16.mxu0 %v2034
    %2901 = vmatpush1.bf16.msra.mxu0 %v2033
    %2902 = vmatprep.subr.bf16.mxu0 %v2036
    %2903 = vmatpush1.bf16.msra.mxu0 %v2035
    %2904 = vmatprep.subr.bf16.mxu0 %v2038
    %2905 = vmatpush1.bf16.msra.mxu0 %v2037
    %2906 = vmatprep.subr.bf16.mxu0 %v2040
    %2907 = vmatpush1.bf16.msra.mxu0 %v2039
    %2908 = vmatprep.subr.bf16.mxu0 %v2042
    %2909 = vmatpush1.bf16.msra.mxu0 %v2041
    %2910 = vmatprep.subr.bf16.mxu0 %v2044
    %2911 = vmatpush1.bf16.msra.mxu0 %v2043
    %2912 = vmatprep.subr.bf16.mxu0 %v2046
    %2913 = vmatpush1.bf16.msra.mxu0 %v2045
    %2914 = vmatprep.subr.bf16.mxu0 %v2048
    %2915 = vmatpush1.bf16.msra.mxu0 %v2047
    %2916 = vmatprep.subr.bf16.mxu0 %v2050
    %2917 = vmatpush1.bf16.msra.mxu0 %v2049
    %2918 = vmatprep.subr.bf16.mxu0 %v2052
    %2919 = vmatpush1.bf16.msra.mxu0 %v2051
    %2920 = vmatprep.subr.bf16.mxu0 %v2054
    %2921 = vmatpush1.bf16.msra.mxu0 %v2053
    %2922 = vmatprep.subr.bf16.mxu0 %v2056
    %2923 = vmatpush1.bf16.msra.mxu0 %v2055
    %2924 = vmatprep.mubr.bf16.mxu0 %v184
    %2925 = vmatmul.mubr.bf16.gmra.mrb[0].mxu0 %v183
    %v2926 = vpop.f32.mrb[0].mxu0
    %v2927 = vadd.f32 %v2884, %v2926
    %v2928 = vpop.f32.mrb[0].mxu0
    %v2929 = vadd.f32 %v2886, %v2928
    %v2930 = vpop.f32.mrb[0].mxu0
    %v2931 = vadd.f32 %v2888, %v2930
    %v2932 = vpop.f32.mrb[0].mxu0
    %v2933 = vadd.f32 %v2890, %v2932
    %2934 = vdwg.mxu0
    %2935 = vmatprep.subr.bf16.mxu0 %v2058
    %2936 = vmatpush1.bf16.msra.mxu0 %v2057
    %2937 = vmatprep.subr.bf16.mxu0 %v2060
    %2938 = vmatpush1.bf16.msra.mxu0 %v2059
    %2939 = vmatprep.subr.bf16.mxu0 %v2062
    %2940 = vmatpush1.bf16.msra.mxu0 %v2061
    %2941 = vmatprep.subr.bf16.mxu0 %v2064
    %2942 = vmatpush1.bf16.msra.mxu0 %v2063
    %2943 = vmatprep.subr.bf16.mxu0 %v2066
    %2944 = vmatpush1.bf16.msra.mxu0 %v2065
    %2945 = vmatprep.subr.bf16.mxu0 %v2068
    %2946 = vmatpush1.bf16.msra.mxu0 %v2067
    %2947 = vmatprep.subr.bf16.mxu0 %v2070
    %2948 = vmatpush1.bf16.msra.mxu0 %v2069
    %2949 = vmatprep.subr.bf16.mxu0 %v2072
    %2950 = vmatpush1.bf16.msra.mxu0 %v2071
    %2951 = vmatprep.subr.bf16.mxu0 %v2074
    %2952 = vmatpush1.bf16.msra.mxu0 %v2073
    %2953 = vmatprep.subr.bf16.mxu0 %v2076
    %2954 = vmatpush1.bf16.msra.mxu0 %v2075
    %2955 = vmatprep.subr.bf16.mxu0 %v2078
    %2956 = vmatpush1.bf16.msra.mxu0 %v2077
    %2957 = vmatprep.subr.bf16.mxu0 %v2080
    %2958 = vmatpush1.bf16.msra.mxu0 %v2079
    %2959 = vmatprep.subr.bf16.mxu0 %v2082
    %2960 = vmatpush1.bf16.msra.mxu0 %v2081
    %2961 = vmatprep.subr.bf16.mxu0 %v2084
    %2962 = vmatpush1.bf16.msra.mxu0 %v2083
    %2963 = vmatprep.subr.bf16.mxu0 %v2086
    %2964 = vmatpush1.bf16.msra.mxu0 %v2085
    %2965 = vmatprep.subr.bf16.mxu0 %v2088
    %2966 = vmatpush1.bf16.msra.mxu0 %v2087
    %2967 = vmatprep.mubr.bf16.mxu0 %v186
    %2968 = vmatmul.mubr.bf16.gmra.mrb[0].mxu0 %v185
    %v2969 = vpop.f32.mrb[0].mxu0
    %v2970 = vadd.f32 %v2927, %v2969
    %v2971 = vpop.f32.mrb[0].mxu0
    %v2972 = vadd.f32 %v2929, %v2971
    %v2973 = vpop.f32.mrb[0].mxu0
    %v2974 = vadd.f32 %v2931, %v2973
    %v2975 = vpop.f32.mrb[0].mxu0
    %v2976 = vadd.f32 %v2933, %v2975
    %2977 = vdwg.mxu0
    %2978 = vmatprep.subr.bf16.mxu0 %v2090
    %2979 = vmatpush1.bf16.msra.mxu0 %v2089
    %2980 = vmatprep.subr.bf16.mxu0 %v2092
    %2981 = vmatpush1.bf16.msra.mxu0 %v2091
    %2982 = vmatprep.subr.bf16.mxu0 %v2094
    %2983 = vmatpush1.bf16.msra.mxu0 %v2093
    %2984 = vmatprep.subr.bf16.mxu0 %v2096
    %2985 = vmatpush1.bf16.msra.mxu0 %v2095
    %2986 = vmatprep.subr.bf16.mxu0 %v2098
    %2987 = vmatpush1.bf16.msra.mxu0 %v2097
    %2988 = vmatprep.subr.bf16.mxu0 %v2100
    %2989 = vmatpush1.bf16.msra.mxu0 %v2099
    %2990 = vmatprep.subr.bf16.mxu0 %v2102
    %2991 = vmatpush1.bf16.msra.mxu0 %v2101
    %2992 = vmatprep.subr.bf16.mxu0 %v2104
    %2993 = vmatpush1.bf16.msra.mxu0 %v2103
    %2994 = vmatprep.subr.bf16.mxu0 %v2106
    %2995 = vmatpush1.bf16.msra.mxu0 %v2105
    %2996 = vmatprep.subr.bf16.mxu0 %v2108
    %2997 = vmatpush1.bf16.msra.mxu0 %v2107
    %2998 = vmatprep.subr.bf16.mxu0 %v2110
    %2999 = vmatpush1.bf16.msra.mxu0 %v2109
    %3000 = vmatprep.subr.bf16.mxu0 %v2112
    %3001 = vmatpush1.bf16.msra.mxu0 %v2111
    %3002 = vmatprep.subr.bf16.mxu0 %v2114
    %3003 = vmatpush1.bf16.msra.mxu0 %v2113
    %3004 = vmatprep.subr.bf16.mxu0 %v2116
    %3005 = vmatpush1.bf16.msra.mxu0 %v2115
    %3006 = vmatprep.subr.bf16.mxu0 %v2118
    %3007 = vmatpush1.bf16.msra.mxu0 %v2117
    %3008 = vmatprep.subr.bf16.mxu0 %v2120
    %3009 = vmatpush1.bf16.msra.mxu0 %v2119
    %3010 = vmatprep.mubr.bf16.mxu0 %v188
    %3011 = vmatmul.mubr.bf16.gmra.mrb[0].mxu0 %v187
    %v3012 = vpop.f32.mrb[0].mxu0
    %v3013 = vadd.f32 %v2970, %v3012
    %v3014 = vpop.f32.mrb[0].mxu0
    %v3015 = vadd.f32 %v2972, %v3014
    %v3016 = vpop.f32.mrb[0].mxu0
    %v3017 = vadd.f32 %v2974, %v3016
    %v3018 = vpop.f32.mrb[0].mxu0
    %v3019 = vadd.f32 %v2976, %v3018
    %3020 = vdwg.mxu0
    %v3021 = vmax.f32 %v3013, 0.0
    %v3022 = vmax.f32 %v3015, 0.0
    %v3023 = vmax.f32 %v3017, 0.0
    %v3024 = vmax.f32 %v3019, 0.0
    %v3025 = vpack.c.bf16 %v3023, %v3021
    %v3026 = vpack.c.bf16 %v3024, %v3022
    %v3027 = vld [vmem:[#allocation8] sm:$0xf]
    %v3028 = vld [vmem:[#allocation8 + $0x4] sm:$0xf]
    %v3029 = vld [vmem:[#allocation8 + $0x8] sm:$0xf]
    %v3030 = vld [vmem:[#allocation8 + $0xc] sm:$0xf]
    %v3031 = vld [vmem:[#allocation8 + $0x10] sm:$0xf]
    %v3032 = vld [vmem:[#allocation8 + $0x14] sm:$0xf]
    %v3033 = vld [vmem:[#allocation8 + $0x18] sm:$0xf]
    %v3034 = vld [vmem:[#allocation8 + $0x1c] sm:$0xf]
    %v3035 = vld [vmem:[#allocation8 + $0x20] sm:$0xf]
    %v3036 = vld [vmem:[#allocation8 + $0x24] sm:$0xf]
    %v3037 = vld [vmem:[#allocation8 + $0x28] sm:$0xf]
    %v3038 = vld [vmem:[#allocation8 + $0x2c] sm:$0xf]
    %v3039 = vld [vmem:[#allocation8 + $0x30] sm:$0xf]
    %v3040 = vld [vmem:[#allocation8 + $0x34] sm:$0xf]
    %v3041 = vld [vmem:[#allocation8 + $0x38] sm:$0xf]
    %v3042 = vld [vmem:[#allocation8 + $0x3c] sm:$0xf]
    %v3043 = vld [vmem:[#allocation8 + $0x40] sm:$0xf]
    %v3044 = vld [vmem:[#allocation8 + $0x44] sm:$0xf]
    %v3045 = vld [vmem:[#allocation8 + $0x48] sm:$0xf]
    %v3046 = vld [vmem:[#allocation8 + $0x4c] sm:$0xf]
    %v3047 = vld [vmem:[#allocation8 + $0x50] sm:$0xf]
    %v3048 = vld [vmem:[#allocation8 + $0x54] sm:$0xf]
    %v3049 = vld [vmem:[#allocation8 + $0x58] sm:$0xf]
    %v3050 = vld [vmem:[#allocation8 + $0x5c] sm:$0xf]
    %v3051 = vld [vmem:[#allocation8 + $0x60] sm:$0xf]
    %v3052 = vld [vmem:[#allocation8 + $0x64] sm:$0xf]
    %v3053 = vld [vmem:[#allocation8 + $0x68] sm:$0xf]
    %v3054 = vld [vmem:[#allocation8 + $0x6c] sm:$0xf]
    %v3055 = vld [vmem:[#allocation8 + $0x70] sm:$0xf]
    %v3056 = vld [vmem:[#allocation8 + $0x74] sm:$0xf]
    %v3057 = vld [vmem:[#allocation8 + $0x78] sm:$0xf]
    %v3058 = vld [vmem:[#allocation8 + $0x7c] sm:$0xf]
    %v3059 = vld [vmem:[#allocation10] sm:$0x1]
    %v3061 = vlaneseq
    %v3062 = vshrl.u32 %v3061, 7
    %v3063 = vsub.s32 0, %v3062
    %v3064 = vrot.slane %v3059, %v3063
    %v3098 = vunpack.c.l.b16 %v3027
    %v3099 = vunpack.c.l.b16 %v3028
    %v3100 = vunpack.c.l.b16 %v3029
    %v3101 = vunpack.c.l.b16 %v3030
    %v3102 = vunpack.c.l.b16 %v3031
    %v3103 = vunpack.c.l.b16 %v3032
    %v3104 = vunpack.c.l.b16 %v3033
    %v3105 = vunpack.c.l.b16 %v3034
    %v3106 = vunpack.c.l.b16 %v3035
    %v3107 = vunpack.c.l.b16 %v3036
    %v3108 = vunpack.c.l.b16 %v3037
    %v3109 = vunpack.c.l.b16 %v3038
    %v3110 = vunpack.c.l.b16 %v3039
    %v3111 = vunpack.c.l.b16 %v3040
    %v3112 = vunpack.c.l.b16 %v3041
    %v3113 = vunpack.c.l.b16 %v3042
    %v3114 = vunpack.c.l.b16 %v3043
    %v3115 = vunpack.c.l.b16 %v3044
    %v3116 = vunpack.c.l.b16 %v3045
    %v3117 = vunpack.c.l.b16 %v3046
    %v3118 = vunpack.c.l.b16 %v3047
    %v3119 = vunpack.c.l.b16 %v3048
    %v3120 = vunpack.c.l.b16 %v3049
    %v3121 = vunpack.c.l.b16 %v3050
    %v3122 = vunpack.c.l.b16 %v3051
    %v3123 = vunpack.c.l.b16 %v3052
    %v3124 = vunpack.c.l.b16 %v3053
    %v3125 = vunpack.c.l.b16 %v3054
    %v3126 = vunpack.c.l.b16 %v3055
    %v3127 = vunpack.c.l.b16 %v3056
    %v3128 = vunpack.c.l.b16 %v3057
    %v3129 = vunpack.c.l.b16 %v3058
    %v3130 = vpack.c.b16 %v3099, %v3098
    %v3131 = vpack.c.b16 %v3101, %v3100
    %v3132 = vpack.c.b16 %v3103, %v3102
    %v3133 = vpack.c.b16 %v3105, %v3104
    %v3134 = vpack.c.b16 %v3107, %v3106
    %v3135 = vpack.c.b16 %v3109, %v3108
    %v3136 = vpack.c.b16 %v3111, %v3110
    %v3137 = vpack.c.b16 %v3113, %v3112
    %v3138 = vpack.c.b16 %v3115, %v3114
    %v3139 = vpack.c.b16 %v3117, %v3116
    %v3140 = vpack.c.b16 %v3119, %v3118
    %v3141 = vpack.c.b16 %v3121, %v3120
    %v3142 = vpack.c.b16 %v3123, %v3122
    %v3143 = vpack.c.b16 %v3125, %v3124
    %v3144 = vpack.c.b16 %v3127, %v3126
    %v3145 = vpack.c.b16 %v3129, %v3128
    %3162 = vmatprep.subr.bf16.mxu0 0
    %3163 = vmatpush1.bf16.msra.mxu0 %v3130
    %3164 = vmatprep.subr.bf16.mxu0 0
    %3165 = vmatpush1.bf16.msra.mxu0 %v3131
    %3166 = vmatprep.subr.bf16.mxu0 0
    %3167 = vmatpush1.bf16.msra.mxu0 %v3132
    %3168 = vmatprep.subr.bf16.mxu0 0
    %3169 = vmatpush1.bf16.msra.mxu0 %v3133
    %3170 = vmatprep.subr.bf16.mxu0 0
    %3171 = vmatpush1.bf16.msra.mxu0 %v3134
    %3172 = vmatprep.subr.bf16.mxu0 0
    %3173 = vmatpush1.bf16.msra.mxu0 %v3135
    %3174 = vmatprep.subr.bf16.mxu0 0
    %3175 = vmatpush1.bf16.msra.mxu0 %v3136
    %3176 = vmatprep.subr.bf16.mxu0 0
    %3177 = vmatpush1.bf16.msra.mxu0 %v3137
    %3178 = vmatprep.subr.bf16.mxu0 0
    %3179 = vmatpush1.bf16.msra.mxu0 %v3138
    %3180 = vmatprep.subr.bf16.mxu0 0
    %3181 = vmatpush1.bf16.msra.mxu0 %v3139
    %3182 = vmatprep.subr.bf16.mxu0 0
    %3183 = vmatpush1.bf16.msra.mxu0 %v3140
    %3184 = vmatprep.subr.bf16.mxu0 0
    %3185 = vmatpush1.bf16.msra.mxu0 %v3141
    %3186 = vmatprep.subr.bf16.mxu0 0
    %3187 = vmatpush1.bf16.msra.mxu0 %v3142
    %3188 = vmatprep.subr.bf16.mxu0 0
    %3189 = vmatpush1.bf16.msra.mxu0 %v3143
    %3190 = vmatprep.subr.bf16.mxu0 0
    %3191 = vmatpush1.bf16.msra.mxu0 %v3144
    %3192 = vmatprep.subr.bf16.mxu0 0
    %3193 = vmatpush1.bf16.msra.mxu0 %v3145
    %3194 = vmatprep.mubr.bf16.mxu0 %v3026
    %3195 = vmatmul.mubr.bf16.gmra.mrb[0].mxu0 %v3025
    %v3196 = vpop.f32.mrb[0].mxu0
    %v3197 = vadd.f32 %v3064, %v3196
    %v3198 = vpop.f32.mrb[0].mxu0
    %v3199 = vpop.f32.mrb[0].mxu0
    %v3200 = vadd.f32 %v3064, %v3199
    %v3201 = vpop.f32.mrb[0].mxu0
    %3202 = vdwg.mxu0
    %v3203 = vmax.f32 %v3197, 0.0
    %v3204 = vmax.f32 %v3200, 0.0
    %v3205 = vpack.c.bf16 %v3204, %v3203
    %v3206 = vld [vmem:[#allocation11] sm:$0xf]
    %v3207 = vld [vmem:[#allocation11 + $0x4] sm:$0xf]
    %v3208 = vld [vmem:[#allocation11 + $0x8] sm:$0xf]
    %v3209 = vld [vmem:[#allocation11 + $0xc] sm:$0xf]
    %v3210 = vld [vmem:[#allocation11 + $0x10] sm:$0xf]
    %v3211 = vld [vmem:[#allocation11 + $0x14] sm:$0xf]
    %v3212 = vld [vmem:[#allocation11 + $0x18] sm:$0xf]
    %v3213 = vld [vmem:[#allocation11 + $0x1c] sm:$0xf]
    %v3214 = vld [vmem:[#allocation11 + $0x20] sm:$0xf]
    %v3215 = vld [vmem:[#allocation11 + $0x24] sm:$0xf]
    %v3216 = vld [vmem:[#allocation11 + $0x28] sm:$0xf]
    %v3217 = vld [vmem:[#allocation11 + $0x2c] sm:$0xf]
    %v3218 = vld [vmem:[#allocation11 + $0x30] sm:$0xf]
    %v3219 = vld [vmem:[#allocation11 + $0x34] sm:$0xf]
    %v3220 = vld [vmem:[#allocation11 + $0x38] sm:$0xf]
    %v3221 = vld [vmem:[#allocation11 + $0x3c] sm:$0xf]
    %v3222 = vld [vmem:[#allocation13] sm:$0x1]
    %v3224 = vlaneseq
    %v3225 = vshrl.u32 %v3224, 7
    %v3226 = vsub.s32 0, %v3225
    %v3227 = vrot.slane %v3222, %v3226
    %v3245 = vunpack.c.l.b16 %v3206
    %v3246 = vunpack.c.l.b16 %v3207
    %v3247 = vunpack.c.l.b16 %v3208
    %v3248 = vunpack.c.l.b16 %v3209
    %v3249 = vunpack.c.l.b16 %v3210
    %v3250 = vunpack.c.l.b16 %v3211
    %v3251 = vunpack.c.l.b16 %v3212
    %v3252 = vunpack.c.l.b16 %v3213
    %v3253 = vunpack.c.l.b16 %v3214
    %v3254 = vunpack.c.l.b16 %v3215
    %v3255 = vunpack.c.l.b16 %v3216
    %v3256 = vunpack.c.l.b16 %v3217
    %v3257 = vunpack.c.l.b16 %v3218
    %v3258 = vunpack.c.l.b16 %v3219
    %v3259 = vunpack.c.l.b16 %v3220
    %v3260 = vunpack.c.l.b16 %v3221
    %v3261 = vpack.c.b16 %v3246, %v3245
    %v3262 = vpack.c.b16 %v3248, %v3247
    %v3263 = vpack.c.b16 %v3250, %v3249
    %v3264 = vpack.c.b16 %v3252, %v3251
    %v3265 = vpack.c.b16 %v3254, %v3253
    %v3266 = vpack.c.b16 %v3256, %v3255
    %v3267 = vpack.c.b16 %v3258, %v3257
    %v3268 = vpack.c.b16 %v3260, %v3259
    %3277 = vmatprep.subr.bf16.mxu0 0
    %3278 = vmatpush1.bf16.msra.mxu0 %v3261
    %3279 = vmatprep.subr.bf16.mxu0 0
    %3280 = vmatpush1.bf16.msra.mxu0 %v3262
    %3281 = vmatprep.subr.bf16.mxu0 0
    %3282 = vmatpush1.bf16.msra.mxu0 %v3263
    %3283 = vmatprep.subr.bf16.mxu0 0
    %3284 = vmatpush1.bf16.msra.mxu0 %v3264
    %3285 = vmatprep.subr.bf16.mxu0 0
    %3286 = vmatpush1.bf16.msra.mxu0 %v3265
    %3287 = vmatprep.subr.bf16.mxu0 0
    %3288 = vmatpush1.bf16.msra.mxu0 %v3266
    %3289 = vmatprep.subr.bf16.mxu0 0
    %3290 = vmatpush1.bf16.msra.mxu0 %v3267
    %3291 = vmatprep.subr.bf16.mxu0 0
    %3292 = vmatpush1.bf16.msra.mxu0 %v3268
    %3293 = vmatprep.subr.bf16.mxu0 0
    %3294 = vmatpush1.bf16.msra.mxu0 0
    %3295 = vmatprep.subr.bf16.mxu0 0
    %3296 = vmatpush1.bf16.msra.mxu0 0
    %3297 = vmatprep.subr.bf16.mxu0 0
    %3298 = vmatpush1.bf16.msra.mxu0 0
    %3299 = vmatprep.subr.bf16.mxu0 0
    %3300 = vmatpush1.bf16.msra.mxu0 0
    %3301 = vmatprep.subr.bf16.mxu0 0
    %3302 = vmatpush1.bf16.msra.mxu0 0
    %3303 = vmatprep.subr.bf16.mxu0 0
    %3304 = vmatpush1.bf16.msra.mxu0 0
    %3305 = vmatprep.subr.bf16.mxu0 0
    %3306 = vmatpush1.bf16.msra.mxu0 0
    %3307 = vmatprep.subr.bf16.mxu0 0
    %3308 = vmatpush1.bf16.msra.mxu0 0
    %3309 = vmatprep.mubr.bf16.mxu0 0
    %3310 = vmatmul.mubr.bf16.gmra.mrb[0].mxu0 %v3205
    %v3311 = vpop.f32.mrb[0].mxu0
    %v3312 = vadd.f32 %v3227, %v3311
    %v3313 = vpop.f32.mrb[0].mxu0
    %v3314 = vpop.f32.mrb[0].mxu0
    %v3315 = vadd.f32 %v3227, %v3314
    %v3316 = vpop.f32.mrb[0].mxu0
    %3317 = vdwg.mxu0
    %3318 = vst [vmem:[#allocation14] sm:$0xff] %v3312
    %3319 = vst [vmem:[#allocation14 + $0x8] sm:$0xff] %v3315
    // Predicated region
    $region58: #{tpu_custom_call.1} parent=1 // pred_check
      _
    $region59: #{tpu_custom_call.1} parent=1 // pred_check_branch
      %3321 = sbr.rel (0) target = $region61
    $region60: #{tpu_custom_call.1} parent=1 // pred_region
      %s3323 = ssub.s32 256, 256
      %3324 = vsyncadd [#allocation4], %s3323
      %s3325 = sshll.u32 [#allocation14], 4
      %s3326 = int_to_ptr.vmem [resolvable:$true] %s3325
      %3331 = dma.vmem_to_hbm [thread:$0]  %s3326, 256, %s7, [#allocation4], 128, 128, 8
    $region61: #{tpu_custom_call.1} parent=1 // pred_fallthru
      _
    // Predicated region
    $region62: #{tpu_custom_call.1} parent=1 // pred_check
      _
    $region63: #{tpu_custom_call.1} parent=1 // pred_check_branch
      %3333 = sbr.rel (0) target = $region65
    $region64: #{tpu_custom_call.1} parent=1 // pred_region
      %3334 = dma.done [#allocation4], 256
    $region65: #{tpu_custom_call.1} parent=1 // pred_fallthru
      _
    %3335 = vsyncpa [#allocation3], 1
    %3336 = vsyncpa [#allocation6], 1
    %3337 = vsyncpa [#allocation9], 1
    %3338 = vsyncpa [#allocation12], 1
    %3339 = vsyncpa [#allocation4], 1

</llo_original>
